<compile_context>
chip_gen: v6e
topology: v6e:2x2x1
jax: 0.10.0
libtpu: 0.0.40
codegen_flags: <defaults>
</compile_context>

<pallas_src>
import functools

import numpy as np
import jax
import jax.numpy as jnp
from jax.experimental import pallas as pl
from jax.experimental.pallas import tpu as pltpu


def _round_up(n, m=128):
    return ((n + m - 1) // m) * m


def _vmem_limit_bytes():
    # ~100 MiB headroom on v5e/v6e (128 MiB physical), <=~54 MiB on v7x (64 MiB).
    try:
        cap = pltpu.get_tpu_info().vmem_capacity_bytes
    except Exception:
        cap = 64 * 1024 * 1024
    return min(int(cap * 0.85), 100 * 1024 * 1024)


# ---------------------------------------------------------------------------
# Pallas kernel: one (batch element, layer) pair per grid step.
#   grid = (B, L); the l == 0 step also runs the fused causal conv init and
#   the l == L-1 step also runs the relu/end1/relu/end2 head + output store.
# ---------------------------------------------------------------------------
def wavenet_kernel(dilation_values,            # static tuple of distinct dilations
                   dil_ref,                    # SMEM (L,) int32   [scalar prefetch]
                   y_ref,                      # (T, 1)  f32   raw audio
                   wc_ref, bc_ref,             # (1, Rp) f32   causal 1x1 conv
                   wfg_ref,                    # (2Rp, 2Dp) bf16  [tap0;tap1] x [filt|gate]
                   wrs_ref,                    # (Dp, S_pad+Rp) bf16 [skip | residual]
                   we1_ref, be1_ref,           # (S_pad, S_pad) bf16, (1, S_pad) f32
                   we2_ref, be2_ref,           # (S_pad, C_pad) bf16, (1, C_pad) f32
                   out_ref,                    # (T, C_pad) f32
                   x_sc,                       # (T, Rp)    f32 residual stream (persistent)
                   skip_sc,                    # (T, S_pad) f32 skip accumulator (persistent)
                   xprev_sc):                  # (T, Rp)    f32 shifted-tap scratch
    l = pl.program_id(1)
    num_layers = pl.num_programs(1)
    T, Rp = x_sc.shape
    Dp = wfg_ref.shape[-1] // 2
    S_pad = skip_sc.shape[-1]

    # ---- layer 0: fused causal 1x1 conv (in_channels=1) + zero accumulators ----
    @pl.when(l == 0)
    def _init():
        # (T,1) * (1,Rp) + (1,Rp) -> (T,Rp); padded lanes stay exactly 0.
        x_sc[...] = y_ref[...] * wc_ref[...] + bc_ref[...]
        skip_sc[...] = jnp.zeros_like(skip_sc)

    x = x_sc[...]                                                   # (T, Rp) f32

    # ---- causal dilated tap: x_prev[t] = x[t - d], zeros for t < d ----------
    # Dilations are powers of two that repeat across stacks; branch over the
    # few distinct values so each branch uses a *static* roll + mask.
    d = dil_ref[l]
    t_idx = jax.lax.broadcasted_iota(jnp.int32, (T, 1), 0)
    for dv in dilation_values:
        @pl.when(d == dv)
        def _shift(dv=dv):
            xprev_sc[...] = jnp.where(t_idx >= dv,
                                      jnp.roll(x, dv, axis=0), 0.0)

    # ---- fused filter+gate dilated conv: one lane-aligned matmul ------------
    xcat = jnp.concatenate([xprev_sc[...].astype(jnp.bfloat16),
                            x.astype(jnp.bfloat16)], axis=-1)       # (T, 2Rp)
    fg = jnp.dot(xcat, wfg_ref[...],
                 preferred_element_type=jnp.float32)                # (T, 2Dp)
    f = fg[:, :Dp]
    g = fg[:, Dp:]
    # NOTE: f32 transcendentals (v5e has no bf16 EUP); on v6e/v7x these could
    # run in bf16 to relieve the single EUP.
    z = (jnp.tanh(f) * jax.nn.sigmoid(g)).astype(jnp.bfloat16)      # (T, Dp)

    # ---- fused skip + residual 1x1 convs: one matmul, lane-aligned split ----
    rs = jnp.dot(z, wrs_ref[...],
                 preferred_element_type=jnp.float32)                # (T, S_pad+Rp)
    skip_new = skip_sc[...] + rs[:, :S_pad]
    skip_sc[...] = skip_new
    x_sc[...] = x + rs[:, S_pad:]

    # ---- head on the final layer step ---------------------------------------
    @pl.when(l == num_layers - 1)
    def _head():
        h = jnp.maximum(skip_new, 0.0).astype(jnp.bfloat16)
        h1 = jnp.dot(h, we1_ref[...],
                     preferred_element_type=jnp.float32) + be1_ref[...]
        h1 = jnp.maximum(h1, 0.0).astype(jnp.bfloat16)
        o = jnp.dot(h1, we2_ref[...],
                    preferred_element_type=jnp.float32) + be2_ref[...]
        out_ref[...] = o.astype(out_ref.dtype)                      # (T, C_pad)


# ---------------------------------------------------------------------------
# Wrapper: pallas_call with (batch, layer) grid, per-layer weight streaming.
# ---------------------------------------------------------------------------
def wavenet_forward_pallas(y_btc, params, dilations, classes):
    B, T, _ = y_btc.shape
    L = len(dilations)
    Rp = params["wc"].shape[-1]
    s_pad = params["we1"].shape[-1]
    c_pad = params["we2"].shape[-1]

    dil_arr = jnp.asarray(np.asarray(dilations, dtype=np.int32))
    dilation_values = tuple(sorted(set(int(v) for v in dilations)))

    kernel = functools.partial(wavenet_kernel, dilation_values)

    def fixed(a):
        return pl.BlockSpec(a.shape, lambda b, l, dil, _nd=a.ndim: (0,) * _nd)

    def per_layer(a):
        return pl.BlockSpec((None,) + a.shape[1:], lambda b, l, dil: (l, 0, 0))

    grid_spec = pltpu.PrefetchScalarGridSpec(
        num_scalar_prefetch=1,
        grid=(B, L),
        in_specs=[
            pl.BlockSpec((None, T, 1), lambda b, l, dil: (b, 0, 0)),    # y
            fixed(params["wc"]), fixed(params["bc"]),                   # causal conv
            per_layer(params["w_fg"]), per_layer(params["w_rs"]),       # per-layer
            fixed(params["we1"]), fixed(params["be1"]),                 # head
            fixed(params["we2"]), fixed(params["be2"]),
        ],
        out_specs=pl.BlockSpec((None, T, c_pad), lambda b, l, dil: (b, 0, 0)),
        scratch_shapes=[
            pltpu.VMEM((T, Rp), jnp.float32),        # residual stream x
            pltpu.VMEM((T, s_pad), jnp.float32),     # skip accumulator
            pltpu.VMEM((T, Rp), jnp.float32),        # shifted causal tap
        ],
    )

    out = pl.pallas_call(
        kernel,
        out_shape=jax.ShapeDtypeStruct((B, T, c_pad), jnp.float32),
        grid_spec=grid_spec,
        compiler_params=pltpu.CompilerParams(
            dimension_semantics=("parallel", "arbitrary"),
            vmem_limit_bytes=_vmem_limit_bytes()),
    )(dil_arr, y_btc.astype(jnp.float32),
      params["wc"], params["bc"],
      params["w_fg"], params["w_rs"],
      params["we1"], params["be1"],
      params["we2"], params["be2"])

    return out[..., :classes]                                          # (B, T, classes)


# ---------------------------------------------------------------------------
# Deterministic parameter init (PyTorch conv-weight layout) + fused conversion.
# ---------------------------------------------------------------------------
def init_conv_params(key, layers, stacks, R, D, S, C, K=2, scale=0.1):
    L = layers * stacks
    ks = jax.random.split(key, 10)
    return dict(
        w_causal=jax.random.normal(ks[0], (R, 1, 1), jnp.float32) * scale,
        b_causal=jax.random.normal(ks[1], (R,), jnp.float32) * scale,
        w_filters=jax.random.normal(ks[2], (L, D, R, K), jnp.float32) * scale,
        w_gates=jax.random.normal(ks[3], (L, D, R, K), jnp.float32) * scale,
        w_res=jax.random.normal(ks[4], (L, R, D, 1), jnp.float32) * scale,
        w_skip=jax.random.normal(ks[5], (L, S, D, 1), jnp.float32) * scale,
        w_end1=jax.random.normal(ks[6], (S, S, 1), jnp.float32) * scale,
        b_end1=jax.random.normal(ks[7], (S,), jnp.float32) * scale,
        w_end2=jax.random.normal(ks[8], (C, S, 1), jnp.float32) * scale,
        b_end2=jax.random.normal(ks[9], (C,), jnp.float32) * scale,
    )


def to_fused_params(p):
    """Convert PyTorch-style (Cout, Cin, K) conv weights into fused, 128-lane
    padded matmul weights (bf16 MXU operands, f32 biases)."""
    bf = jnp.bfloat16
    L, D, R, K = p["w_filters"].shape
    S = p["w_skip"].shape[1]
    C = p["w_end2"].shape[0]
    Rp, Dp = _round_up(R), _round_up(D)
    s_pad, c_pad = _round_up(S), _round_up(C)

    def pad2(a, rows, cols):                 # (L, r, c) -> (L, rows, cols)
        return jnp.pad(a, ((0, 0), (0, rows - a.shape[1]), (0, cols - a.shape[2])))

    # dilated conv: (L, D, R, K) -> per-tap (L, R, D), padded to (L, Rp, Dp)
    wf = jnp.transpose(p["w_filters"], (0, 3, 2, 1))     # (L, K, R, D)
    wg = jnp.transpose(p["w_gates"], (0, 3, 2, 1))       # (L, K, R, D)

    def tap(k):                                          # cols [filter | gate]
        return jnp.concatenate([pad2(wf[:, k], Rp, Dp),
                                pad2(wg[:, k], Rp, Dp)], axis=-1)    # (L, Rp, 2Dp)

    # rows [0:Rp] multiply x[t-d] (tap 0), rows [Rp:2Rp] multiply x[t] (tap 1)
    w_fg = jnp.concatenate([tap(0), tap(1)], axis=1)     # (L, 2Rp, 2Dp)

    ws = jnp.transpose(p["w_skip"][..., 0], (0, 2, 1))   # (L, D, S)
    wr = jnp.transpose(p["w_res"][..., 0], (0, 2, 1))    # (L, D, R)
    # cols [0:S_pad] -> skip, cols [S_pad:S_pad+Rp] -> residual (both aligned)
    w_rs = jnp.concatenate([pad2(ws, Dp, s_pad),
                            pad2(wr, Dp, Rp)], axis=-1)  # (L, Dp, S_pad+Rp)

    we1 = jnp.pad(p["w_end1"][:, :, 0].T, ((0, s_pad - S), (0, s_pad - S)))
    be1 = jnp.pad(p["b_end1"], (0, s_pad - S))[None, :]
    we2 = jnp.pad(p["w_end2"][:, :, 0].T, ((0, s_pad - S), (0, c_pad - C)))
    be2 = jnp.pad(p["b_end2"], (0, c_pad - C))[None, :]

    wc = jnp.pad(p["w_causal"][:, 0, 0], (0, Rp - R))[None, :]       # (1, Rp)
    bc = jnp.pad(p["b_causal"], (0, Rp - R))[None, :]                # (1, Rp)

    return dict(
        wc=wc.astype(jnp.float32), bc=bc.astype(jnp.float32),
        w_fg=w_fg.astype(bf), w_rs=w_rs.astype(bf),
        we1=we1.astype(bf), be1=be1.astype(jnp.float32),
        we2=we2.astype(bf), be2=be2.astype(jnp.float32),
    )


# ---------------------------------------------------------------------------
# Pure-JAX f32 reference (replica of WavenetModel.forward, cin_channels == -1).
# ---------------------------------------------------------------------------
def _conv1d(x, w, b=None, dilation=1, padding=0):
    # x: (B, Cin, T), w: (Cout, Cin, K) -- matches torch.nn.Conv1d semantics
    out = jax.lax.conv_general_dilated(
        x, w, window_strides=(1,), padding=[(padding, padding)],
        rhs_dilation=(dilation,), dimension_numbers=("NCH", "OIH", "NCH"))
    if b is not None:
        out = out + b[None, :, None]
    return out


def reference_forward(y_ncl, p, layers, stacks, K=2):
    x = _conv1d(y_ncl, p["w_causal"], p["b_causal"])
    skip = 0.0
    i = 0
    for _ in range(stacks):
        dilation = 1
        for _ in range(layers):
            pad = (K - 1) * dilation
            f = _conv1d(x, p["w_filters"][i], dilation=dilation, padding=pad)
            g = _conv1d(x, p["w_gates"][i], dilation=dilation, padding=pad)
            out = jnp.tanh(f) * jax.nn.sigmoid(g)
            out = out[:, :, :x.shape[-1]]
            skip = _conv1d(out, p["w_skip"][i]) + skip
            x = x + _conv1d(out, p["w_res"][i])
            dilation *= 2
            i += 1
    x = jax.nn.relu(skip)
    x = jax.nn.relu(_conv1d(x, p["w_end1"], p["b_end1"]))
    x = _conv1d(x, p["w_end2"], p["b_end2"])
    return jnp.transpose(x, (0, 2, 1))                   # (B, T, classes)


# ---------------------------------------------------------------------------
if __name__ == "__main__":
    # Small config consistent with the module's constructor signature.
    layers, stacks = 3, 2
    dilation_channels = 16
    residual_channels = 16
    skip_channels = 32
    classes = 32
    kernel_size = 2
    B, T = 2, 64

    key = jax.random.PRNGKey(0)
    k_param, k_input = jax.random.split(key)

    conv_params = init_conv_params(
        k_param, layers, stacks,
        residual_channels, dilation_channels, skip_channels, classes,
        K=kernel_size)
    fused_params = to_fused_params(conv_params)

    # dilation schedule exactly as in __init__: per stack 1, 2, 4, ...
    dilations = []
    for _ in range(stacks):
        d = 1
        for _ in range(layers):
            dilations.append(d)
            d *= 2

    # input audio in PyTorch layout (B, 1, T); kernel path uses (B, T, 1)
    y_ncl = jax.random.normal(k_input, (B, 1, T), jnp.float32)
    y_btc = jnp.transpose(y_ncl, (0, 2, 1))

    out = wavenet_forward_pallas(y_btc, fused_params, dilations, classes)
    out = jax.block_until_ready(out)

    ref = reference_forward(y_ncl, conv_params, layers, stacks, K=kernel_size)
    ref = jax.block_until_ready(ref)

    assert out.shape == (B, T, classes), out.shape
    np.testing.assert_allclose(np.asarray(out), np.asarray(ref),
                               rtol=2e-2, atol=2e-2)
    print("KERNEL_OK")
</pallas_src>

<mosaic_0001>
module attributes {stable_mosaic.version = 11 : i64} {
  func.func @wavenet_kernel(%arg0: i32, %arg1: i32, %arg2: memref<6xi32, #tpu.memory_space<smem>>, %arg3: memref<1x64x1xf32, #tpu.memory_space<vmem>>, %arg4: memref<1x128xf32, #tpu.memory_space<vmem>>, %arg5: memref<1x128xf32, #tpu.memory_space<vmem>>, %arg6: memref<1x256x256xbf16, #tpu.memory_space<vmem>>, %arg7: memref<1x128x256xbf16, #tpu.memory_space<vmem>>, %arg8: memref<128x128xbf16, #tpu.memory_space<vmem>>, %arg9: memref<1x128xf32, #tpu.memory_space<vmem>>, %arg10: memref<128x128xbf16, #tpu.memory_space<vmem>>, %arg11: memref<1x128xf32, #tpu.memory_space<vmem>>, %arg12: memref<1x64x128xf32, #tpu.memory_space<vmem>>, %arg13: memref<64x128xf32, #tpu.memory_space<vmem>>, %arg14: memref<64x128xf32, #tpu.memory_space<vmem>>, %arg15: memref<64x128xf32, #tpu.memory_space<vmem>>) attributes {dimension_semantics = [#tpu.dimension_semantics<parallel>, #tpu.dimension_semantics<arbitrary>], iteration_bounds = array<i64: 2, 6>, scalar_prefetch = 1 : i64, scratch_operands = 3 : i64, tpu.core_type = #tpu.core_type<tc>, window_params = [{transform_indices = @transform_0, window_bounds = array<i64: 1, 64, 1>}, {pipeline_mode = #tpu.pipeline_mode<synchronous>, transform_indices = @transform_1, window_bounds = array<i64: 1, 128>}, {pipeline_mode = #tpu.pipeline_mode<synchronous>, transform_indices = @transform_2, window_bounds = array<i64: 1, 128>}, {transform_indices = @transform_3, window_bounds = array<i64: 1, 256, 256>}, {transform_indices = @transform_4, window_bounds = array<i64: 1, 128, 256>}, {pipeline_mode = #tpu.pipeline_mode<synchronous>, transform_indices = @transform_5, window_bounds = array<i64: 128, 128>}, {pipeline_mode = #tpu.pipeline_mode<synchronous>, transform_indices = @transform_6, window_bounds = array<i64: 1, 128>}, {pipeline_mode = #tpu.pipeline_mode<synchronous>, transform_indices = @transform_7, window_bounds = array<i64: 128, 128>}, {pipeline_mode = #tpu.pipeline_mode<synchronous>, transform_indices = @transform_8, window_bounds = array<i64: 1, 128>}, {transform_indices = @transform_9, window_bounds = array<i64: 1, 64, 128>}]} {
    %c0_i32 = arith.constant 0 : i32
    %0 = arith.cmpi eq, %arg1, %c0_i32 : i32
    %1 = arith.extui %0 : i1 to i32
    %c0_i32_0 = arith.constant 0 : i32
    %2 = arith.cmpi ne, %1, %c0_i32_0 : i32
    scf.if %2 {
      %c0_22 = arith.constant 0 : index
      %c0_23 = arith.constant 0 : index
      %c0_24 = arith.constant 0 : index
      %46 = vector.load %arg3[%c0_22, %c0_23, %c0_24] : memref<1x64x1xf32, #tpu.memory_space<vmem>>, vector<1x64x1xf32>
      %47 = vector.shape_cast %46 : vector<1x64x1xf32> to vector<64x1xf32>
      %c0_25 = arith.constant 0 : index
      %c0_26 = arith.constant 0 : index
      %48 = vector.load %arg4[%c0_25, %c0_26] : memref<1x128xf32, #tpu.memory_space<vmem>>, vector<1x128xf32>
      %49 = vector.broadcast %47 : vector<64x1xf32> to vector<64x128xf32>
      %50 = vector.broadcast %48 : vector<1x128xf32> to vector<64x128xf32>
      %51 = arith.mulf %49, %50 : vector<64x128xf32>
      %c0_27 = arith.constant 0 : index
      %c0_28 = arith.constant 0 : index
      %52 = vector.load %arg5[%c0_27, %c0_28] : memref<1x128xf32, #tpu.memory_space<vmem>>, vector<1x128xf32>
      %53 = vector.broadcast %52 : vector<1x128xf32> to vector<64x128xf32>
      %54 = arith.addf %51, %53 : vector<64x128xf32>
      %c0_29 = arith.constant 0 : index
      %c0_30 = arith.constant 0 : index
      %55 = vector.load %arg13[%c0_29, %c0_30] : memref<64x128xf32, #tpu.memory_space<vmem>>, vector<64x128xf32>
      tpu.vector_store %arg13[%c0_29, %c0_30], %54 {strides = array<i32>} : memref<64x128xf32, #tpu.memory_space<vmem>>, vector<64x128xf32>,
      %cst_31 = arith.constant 0.000000e+00 : f32
      %56 = vector.broadcast %cst_31 : f32 to vector<64x128xf32>
      %c0_32 = arith.constant 0 : index
      %c0_33 = arith.constant 0 : index
      %57 = vector.load %arg14[%c0_32, %c0_33] : memref<64x128xf32, #tpu.memory_space<vmem>>, vector<64x128xf32>
      tpu.vector_store %arg14[%c0_32, %c0_33], %56 {strides = array<i32>} : memref<64x128xf32, #tpu.memory_space<vmem>>, vector<64x128xf32>,
    } else {
    }
    %c0 = arith.constant 0 : index
    %c0_1 = arith.constant 0 : index
    %3 = vector.load %arg13[%c0, %c0_1] : memref<64x128xf32, #tpu.memory_space<vmem>>, vector<64x128xf32>
    %4 = arith.index_cast %arg1 : i32 to index
    %5 = memref.load %arg2[%4] : memref<6xi32, #tpu.memory_space<smem>>
    %6 = tpu.iota {dimensions = array<i32: 0>} : vector<64x1xi32>
    %c1_i32 = arith.constant 1 : i32
    %7 = arith.cmpi eq, %5, %c1_i32 : i32
    %8 = arith.extui %7 : i1 to i32
    %c0_i32_2 = arith.constant 0 : i32
    %9 = arith.cmpi ne, %8, %c0_i32_2 : i32
    scf.if %9 {
      %c1_i32_22 = arith.constant 1 : i32
      %46 = vector.broadcast %c1_i32_22 : i32 to vector<64x1xi32>
      %47 = arith.cmpi sge, %6, %46 : vector<64x1xi32>
      %48 = vector.extract_strided_slice %3 {offsets = [63, 0], sizes = [1, 128], strides = [1, 1]} : vector<64x128xf32> to vector<1x128xf32>
      %49 = vector.extract_strided_slice %3 {offsets = [0, 0], sizes = [63, 128], strides = [1, 1]} : vector<64x128xf32> to vector<63x128xf32>
      %50 = tpu.concatenate %48, %49 in 0 : vector<1x128xf32>, vector<63x128xf32> -> vector<64x128xf32>
      %cst_23 = arith.constant 0.000000e+00 : f32
      %51 = vector.shape_cast %47 : vector<64x1xi1> to vector<64x1xi1>
      %52 = vector.broadcast %51 : vector<64x1xi1> to vector<64x128xi1>
      %53 = vector.broadcast %cst_23 : f32 to vector<64x128xf32>
      %54 = arith.select %52, %50, %53 : vector<64x128xi1>, vector<64x128xf32>
      %c0_24 = arith.constant 0 : index
      %c0_25 = arith.constant 0 : index
      %55 = vector.load %arg15[%c0_24, %c0_25] : memref<64x128xf32, #tpu.memory_space<vmem>>, vector<64x128xf32>
      tpu.vector_store %arg15[%c0_24, %c0_25], %54 {strides = array<i32>} : memref<64x128xf32, #tpu.memory_space<vmem>>, vector<64x128xf32>,
    } else {
    }
    %c2_i32 = arith.constant 2 : i32
    %10 = arith.cmpi eq, %5, %c2_i32 : i32
    %11 = arith.extui %10 : i1 to i32
    %c0_i32_3 = arith.constant 0 : i32
    %12 = arith.cmpi ne, %11, %c0_i32_3 : i32
    scf.if %12 {
      %c2_i32_22 = arith.constant 2 : i32
      %46 = vector.broadcast %c2_i32_22 : i32 to vector<64x1xi32>
      %47 = arith.cmpi sge, %6, %46 : vector<64x1xi32>
      %48 = vector.extract_strided_slice %3 {offsets = [62, 0], sizes = [2, 128], strides = [1, 1]} : vector<64x128xf32> to vector<2x128xf32>
      %49 = vector.extract_strided_slice %3 {offsets = [0, 0], sizes = [62, 128], strides = [1, 1]} : vector<64x128xf32> to vector<62x128xf32>
      %50 = tpu.concatenate %48, %49 in 0 : vector<2x128xf32>, vector<62x128xf32> -> vector<64x128xf32>
      %cst_23 = arith.constant 0.000000e+00 : f32
      %51 = vector.shape_cast %47 : vector<64x1xi1> to vector<64x1xi1>
      %52 = vector.broadcast %51 : vector<64x1xi1> to vector<64x128xi1>
      %53 = vector.broadcast %cst_23 : f32 to vector<64x128xf32>
      %54 = arith.select %52, %50, %53 : vector<64x128xi1>, vector<64x128xf32>
      %c0_24 = arith.constant 0 : index
      %c0_25 = arith.constant 0 : index
      %55 = vector.load %arg15[%c0_24, %c0_25] : memref<64x128xf32, #tpu.memory_space<vmem>>, vector<64x128xf32>
      tpu.vector_store %arg15[%c0_24, %c0_25], %54 {strides = array<i32>} : memref<64x128xf32, #tpu.memory_space<vmem>>, vector<64x128xf32>,
    } else {
    }
    %c4_i32 = arith.constant 4 : i32
    %13 = arith.cmpi eq, %5, %c4_i32 : i32
    %14 = arith.extui %13 : i1 to i32
    %c0_i32_4 = arith.constant 0 : i32
    %15 = arith.cmpi ne, %14, %c0_i32_4 : i32
    scf.if %15 {
      %c4_i32_22 = arith.constant 4 : i32
      %46 = vector.broadcast %c4_i32_22 : i32 to vector<64x1xi32>
      %47 = arith.cmpi sge, %6, %46 : vector<64x1xi32>
      %48 = vector.extract_strided_slice %3 {offsets = [60, 0], sizes = [4, 128], strides = [1, 1]} : vector<64x128xf32> to vector<4x128xf32>
      %49 = vector.extract_strided_slice %3 {offsets = [0, 0], sizes = [60, 128], strides = [1, 1]} : vector<64x128xf32> to vector<60x128xf32>
      %50 = tpu.concatenate %48, %49 in 0 : vector<4x128xf32>, vector<60x128xf32> -> vector<64x128xf32>
      %cst_23 = arith.constant 0.000000e+00 : f32
      %51 = vector.shape_cast %47 : vector<64x1xi1> to vector<64x1xi1>
      %52 = vector.broadcast %51 : vector<64x1xi1> to vector<64x128xi1>
      %53 = vector.broadcast %cst_23 : f32 to vector<64x128xf32>
      %54 = arith.select %52, %50, %53 : vector<64x128xi1>, vector<64x128xf32>
      %c0_24 = arith.constant 0 : index
      %c0_25 = arith.constant 0 : index
      %55 = vector.load %arg15[%c0_24, %c0_25] : memref<64x128xf32, #tpu.memory_space<vmem>>, vector<64x128xf32>
      tpu.vector_store %arg15[%c0_24, %c0_25], %54 {strides = array<i32>} : memref<64x128xf32, #tpu.memory_space<vmem>>, vector<64x128xf32>,
    } else {
    }
    %c0_5 = arith.constant 0 : index
    %c0_6 = arith.constant 0 : index
    %16 = vector.load %arg15[%c0_5, %c0_6] : memref<64x128xf32, #tpu.memory_space<vmem>>, vector<64x128xf32>
    %17 = arith.truncf %16 : vector<64x128xf32> to vector<64x128xbf16>
    %18 = arith.truncf %3 : vector<64x128xf32> to vector<64x128xbf16>
    %19 = tpu.concatenate %17, %18 in 1 : vector<64x128xbf16>, vector<64x128xbf16> -> vector<64x256xbf16>
    %c0_7 = arith.constant 0 : index
    %c0_8 = arith.constant 0 : index
    %c0_9 = arith.constant 0 : index
    %20 = vector.load %arg6[%c0_7, %c0_8, %c0_9] : memref<1x256x256xbf16, #tpu.memory_space<vmem>>, vector<1x256x256xbf16>
    %21 = vector.shape_cast %20 : vector<1x256x256xbf16> to vector<256x256xbf16>
    %cst = arith.constant dense<0.000000e+00> : vector<64x256xf32>
    %22 = tpu.matmul %19, %21, %cst {dimension_numbers = #tpu.dot_dimension_numbers<[1], [0], [0], [1], [0, 0, 1, 1], [], []>} : vector<64x256xbf16>, vector<256x256xbf16>, vector<64x256xf32> -> vector<64x256xf32>
    %23 = vector.extract_strided_slice %22 {offsets = [0, 0], sizes = [64, 128], strides = [1, 1]} : vector<64x256xf32> to vector<64x128xf32>
    %24 = vector.extract_strided_slice %22 {offsets = [0, 128], sizes = [64, 128], strides = [1, 1]} : vector<64x256xf32> to vector<64x128xf32>
    %25 = math.tanh %23 : vector<64x128xf32>
    %26 = arith.negf %24 : vector<64x128xf32>
    %27 = math.exp %26 : vector<64x128xf32>
    %cst_10 = arith.constant 1.000000e+00 : f32
    %28 = vector.broadcast %cst_10 : f32 to vector<64x128xf32>
    %29 = arith.addf %28, %27 : vector<64x128xf32>
    %30 = arith.divf %28, %29 : vector<64x128xf32>
    %31 = arith.mulf %25, %30 : vector<64x128xf32>
    %32 = arith.truncf %31 : vector<64x128xf32> to vector<64x128xbf16>
    %c0_11 = arith.constant 0 : index
    %c0_12 = arith.constant 0 : index
    %c0_13 = arith.constant 0 : index
    %33 = vector.load %arg7[%c0_11, %c0_12, %c0_13] : memref<1x128x256xbf16, #tpu.memory_space<vmem>>, vector<1x128x256xbf16>
    %34 = vector.shape_cast %33 : vector<1x128x256xbf16> to vector<128x256xbf16>
    %cst_14 = arith.constant dense<0.000000e+00> : vector<64x256xf32>
    %35 = tpu.matmul %32, %34, %cst_14 {dimension_numbers = #tpu.dot_dimension_numbers<[1], [0], [0], [1], [0, 0, 1, 1], [], []>} : vector<64x128xbf16>, vector<128x256xbf16>, vector<64x256xf32> -> vector<64x256xf32>
    %c0_15 = arith.constant 0 : index
    %c0_16 = arith.constant 0 : index
    %36 = vector.load %arg14[%c0_15, %c0_16] : memref<64x128xf32, #tpu.memory_space<vmem>>, vector<64x128xf32>
    %37 = vector.extract_strided_slice %35 {offsets = [0, 0], sizes = [64, 128], strides = [1, 1]} : vector<64x256xf32> to vector<64x128xf32>
    %38 = arith.addf %36, %37 : vector<64x128xf32>
    %c0_17 = arith.constant 0 : index
    %c0_18 = arith.constant 0 : index
    %39 = vector.load %arg14[%c0_17, %c0_18] : memref<64x128xf32, #tpu.memory_space<vmem>>, vector<64x128xf32>
    tpu.vector_store %arg14[%c0_17, %c0_18], %38 {strides = array<i32>} : memref<64x128xf32, #tpu.memory_space<vmem>>, vector<64x128xf32>,
    %40 = vector.extract_strided_slice %35 {offsets = [0, 128], sizes = [64, 128], strides = [1, 1]} : vector<64x256xf32> to vector<64x128xf32>
    %41 = arith.addf %3, %40 : vector<64x128xf32>
    %c0_19 = arith.constant 0 : index
    %c0_20 = arith.constant 0 : index
    %42 = vector.load %arg13[%c0_19, %c0_20] : memref<64x128xf32, #tpu.memory_space<vmem>>, vector<64x128xf32>
    tpu.vector_store %arg13[%c0_19, %c0_20], %41 {strides = array<i32>} : memref<64x128xf32, #tpu.memory_space<vmem>>, vector<64x128xf32>,
    %c5_i32 = arith.constant 5 : i32
    %43 = arith.cmpi eq, %arg1, %c5_i32 : i32
    %44 = arith.extui %43 : i1 to i32
    %c0_i32_21 = arith.constant 0 : i32
    %45 = arith.cmpi ne, %44, %c0_i32_21 : i32
    scf.if %45 {
      %cst_22 = arith.constant 0.000000e+00 : f32
      %46 = vector.broadcast %cst_22 : f32 to vector<64x128xf32>
      %47 = arith.maximumf %38, %46 : vector<64x128xf32>
      %48 = arith.truncf %47 : vector<64x128xf32> to vector<64x128xbf16>
      %c0_23 = arith.constant 0 : index
      %c0_24 = arith.constant 0 : index
      %49 = vector.load %arg8[%c0_23, %c0_24] : memref<128x128xbf16, #tpu.memory_space<vmem>>, vector<128x128xbf16>
      %cst_25 = arith.constant dense<0.000000e+00> : vector<64x128xf32>
      %50 = tpu.matmul %48, %49, %cst_25 {dimension_numbers = #tpu.dot_dimension_numbers<[1], [0], [0], [1], [0, 0, 1, 1], [], []>} : vector<64x128xbf16>, vector<128x128xbf16>, vector<64x128xf32> -> vector<64x128xf32>
      %c0_26 = arith.constant 0 : index
      %c0_27 = arith.constant 0 : index
      %51 = vector.load %arg9[%c0_26, %c0_27] : memref<1x128xf32, #tpu.memory_space<vmem>>, vector<1x128xf32>
      %52 = vector.broadcast %51 : vector<1x128xf32> to vector<64x128xf32>
      %53 = arith.addf %50, %52 : vector<64x128xf32>
      %cst_28 = arith.constant 0.000000e+00 : f32
      %54 = vector.broadcast %cst_28 : f32 to vector<64x128xf32>
      %55 = arith.maximumf %53, %54 : vector<64x128xf32>
      %56 = arith.truncf %55 : vector<64x128xf32> to vector<64x128xbf16>
      %c0_29 = arith.constant 0 : index
      %c0_30 = arith.constant 0 : index
      %57 = vector.load %arg10[%c0_29, %c0_30] : memref<128x128xbf16, #tpu.memory_space<vmem>>, vector<128x128xbf16>
      %cst_31 = arith.constant dense<0.000000e+00> : vector<64x128xf32>
      %58 = tpu.matmul %56, %57, %cst_31 {dimension_numbers = #tpu.dot_dimension_numbers<[1], [0], [0], [1], [0, 0, 1, 1], [], []>} : vector<64x128xbf16>, vector<128x128xbf16>, vector<64x128xf32> -> vector<64x128xf32>
      %c0_32 = arith.constant 0 : index
      %c0_33 = arith.constant 0 : index
      %59 = vector.load %arg11[%c0_32, %c0_33] : memref<1x128xf32, #tpu.memory_space<vmem>>, vector<1x128xf32>
      %60 = vector.broadcast %59 : vector<1x128xf32> to vector<64x128xf32>
      %61 = arith.addf %58, %60 : vector<64x128xf32>
      %c0_34 = arith.constant 0 : index
      %c0_35 = arith.constant 0 : index
      %c0_36 = arith.constant 0 : index
      %62 = vector.load %arg12[%c0_34, %c0_35, %c0_36] : memref<1x64x128xf32, #tpu.memory_space<vmem>>, vector<1x64x128xf32>
      %63 = vector.shape_cast %62 : vector<1x64x128xf32> to vector<64x128xf32>
      %64 = vector.shape_cast %61 : vector<64x128xf32> to vector<1x64x128xf32>
      tpu.vector_store %arg12[%c0_34, %c0_35, %c0_36], %64 {strides = array<i32>} : memref<1x64x128xf32, #tpu.memory_space<vmem>>, vector<1x64x128xf32>,
    } else {
    }
    return
  }
  func.func @transform_0(%arg0: i32, %arg1: i32, %arg2: memref<6xi32, #tpu.memory_space<smem>>) -> (i32, i32, i32) {
    %c0_i32 = arith.constant 0 : i32
    %c0_i32_0 = arith.constant 0 : i32
    %c0_i32_1 = arith.constant 0 : i32
    return %arg0, %c0_i32, %c0_i32_0 : i32, i32, i32
  }
  func.func @transform_1(%arg0: i32, %arg1: i32, %arg2: memref<6xi32, #tpu.memory_space<smem>>) -> (i32, i32) {
    %c0_i32 = arith.constant 0 : i32
    %c0_i32_0 = arith.constant 0 : i32
    %c0_i32_1 = arith.constant 0 : i32
    return %c0_i32, %c0_i32_0 : i32, i32
  }
  func.func @transform_2(%arg0: i32, %arg1: i32, %arg2: memref<6xi32, #tpu.memory_space<smem>>) -> (i32, i32) {
    %c0_i32 = arith.constant 0 : i32
    %c0_i32_0 = arith.constant 0 : i32
    %c0_i32_1 = arith.constant 0 : i32
    return %c0_i32, %c0_i32_0 : i32, i32
  }
  func.func @transform_3(%arg0: i32, %arg1: i32, %arg2: memref<6xi32, #tpu.memory_space<smem>>) -> (i32, i32, i32) {
    %c0_i32 = arith.constant 0 : i32
    %c0_i32_0 = arith.constant 0 : i32
    %c0_i32_1 = arith.constant 0 : i32
    return %arg1, %c0_i32, %c0_i32_0 : i32, i32, i32
  }
  func.func @transform_4(%arg0: i32, %arg1: i32, %arg2: memref<6xi32, #tpu.memory_space<smem>>) -> (i32, i32, i32) {
    %c0_i32 = arith.constant 0 : i32
    %c0_i32_0 = arith.constant 0 : i32
    %c0_i32_1 = arith.constant 0 : i32
    return %arg1, %c0_i32, %c0_i32_0 : i32, i32, i32
  }
  func.func @transform_5(%arg0: i32, %arg1: i32, %arg2: memref<6xi32, #tpu.memory_space<smem>>) -> (i32, i32) {
    %c0_i32 = arith.constant 0 : i32
    %c0_i32_0 = arith.constant 0 : i32
    %c0_i32_1 = arith.constant 0 : i32
    return %c0_i32, %c0_i32_0 : i32, i32
  }
  func.func @transform_6(%arg0: i32, %arg1: i32, %arg2: memref<6xi32, #tpu.memory_space<smem>>) -> (i32, i32) {
    %c0_i32 = arith.constant 0 : i32
    %c0_i32_0 = arith.constant 0 : i32
    %c0_i32_1 = arith.constant 0 : i32
    return %c0_i32, %c0_i32_0 : i32, i32
  }
  func.func @transform_7(%arg0: i32, %arg1: i32, %arg2: memref<6xi32, #tpu.memory_space<smem>>) -> (i32, i32) {
    %c0_i32 = arith.constant 0 : i32
    %c0_i32_0 = arith.constant 0 : i32
    %c0_i32_1 = arith.constant 0 : i32
    return %c0_i32, %c0_i32_0 : i32, i32
  }
  func.func @transform_8(%arg0: i32, %arg1: i32, %arg2: memref<6xi32, #tpu.memory_space<smem>>) -> (i32, i32) {
    %c0_i32 = arith.constant 0 : i32
    %c0_i32_0 = arith.constant 0 : i32
    %c0_i32_1 = arith.constant 0 : i32
    return %c0_i32, %c0_i32_0 : i32, i32
  }
  func.func @transform_9(%arg0: i32, %arg1: i32, %arg2: memref<6xi32, #tpu.memory_space<smem>>) -> (i32, i32, i32) {
    %c0_i32 = arith.constant 0 : i32
    %c0_i32_0 = arith.constant 0 : i32
    %c0_i32_1 = arith.constant 0 : i32
    return %arg0, %c0_i32, %c0_i32_0 : i32, i32, i32
  }
}

</mosaic_0001>

<llo_original>
// kernel: tpu_custom_call.1
$region0: #{tpu_custom_call.1}
  #allocation0 [shape = 'u32[]', space=smem, size = 0x4, offset = 0x4, fixed_abs, tag = 'smem constant byte address 0x4 - core index']
  #allocation1 [shape = 'u32[144,128]{1,0:T(1,128)}', space=vmem, size = 0x12000, scoped, tag = 'internal scratch']
  #allocation2 [shape = 'f32[64,128]{1,0:T(8,128)}', space=vmem, size = 0x8000, scoped, tag = 'scratch operand']
  #allocation3 [shape = 'f32[64,128]{1,0:T(8,128)}', space=vmem, size = 0x8000, scoped, tag = 'scratch operand']
  #allocation4 [shape = 'f32[64,128]{1,0:T(8,128)}', space=vmem, size = 0x8000, scoped, tag = 'scratch operand']
  #allocation5 [shape = 's32[1]{0}', space=sflag, size = 0x4, scoped, tag = 'scoped memory for tpu_custom_call.1']
  #allocation6 [shape = 'u8[512]{0}', space=smem, size = 0x200, scoped, tag = 'prefetched SMEM operand 0']
  %s0 = inlined_call_operand.vmem [shape: s32[6], index: 0, kind: input, shape index: {}]
  %s1 = inlined_call_operand.vmem [shape: f32[2,64,1], index: 1, kind: input, shape index: {}]
  %s2 = inlined_call_operand.vmem [shape: f32[1,128], index: 2, kind: input, shape index: {}]
  %s3 = inlined_call_operand.vmem [shape: f32[1,128], index: 3, kind: input, shape index: {}]
  %s4 = inlined_call_operand.hbm [shape: bf16[6,256,256], index: 4, kind: input, shape index: {}]
  %s5 = inlined_call_operand.hbm [shape: bf16[6,128,256], index: 5, kind: input, shape index: {}]
  %s6 = inlined_call_operand.vmem [shape: bf16[128,128], index: 6, kind: input, shape index: {}]
  %s7 = inlined_call_operand.vmem [shape: f32[1,128], index: 7, kind: input, shape index: {}]
  %s8 = inlined_call_operand.vmem [shape: bf16[128,128], index: 8, kind: input, shape index: {}]
  %s9 = inlined_call_operand.vmem [shape: f32[1,128], index: 9, kind: input, shape index: {}]
  %s10 = inlined_call_operand.hbm [shape: f32[2,64,128], index: 10, kind: output, shape index: {}]
  %s11 = sld [smem:[#allocation0]]
  $region97: #{tpu_custom_call.1} parent=0
    _
  %s13 = ssub.s32 1, %s11
  %s14 = scalar_select 0, %s13, %s11
  %s15 = sshll.u32 %s0, 4
  %s16 = int_to_ptr.vmem [resolvable:$true] %s15
  %18 = dma.vmem_to_smem %s16, 16, [#allocation6], [#allocation5]
  %19 = dma.done [#allocation5], 16
  %20 = sfence
  $region1: #{tpu_custom_call.1} parent=0
    #allocation7 [shape = 'u8[262144]{0}', space=vmem, size = 0x40000, scoped, tag = 'input window, operand 4']
    #allocation8 [shape = 's32[2]{0}', space=sflag, size = 0x8, scoped, tag = 'scoped memory for tpu_custom_call.1']
    #allocation9 [shape = 's32[2]{0}', space=sflag, size = 0x8, scoped, tag = 'scoped memory for tpu_custom_call.1']
    #allocation10 [shape = 'u8[131072]{0}', space=vmem, size = 0x20000, scoped, tag = 'input window, operand 5']
    #allocation11 [shape = 's32[2]{0}', space=sflag, size = 0x8, scoped, tag = 'scoped memory for tpu_custom_call.1']
    #allocation12 [shape = 'u8[65536]{0}', space=vmem, size = 0x10000, scoped, tag = 'output window, operand 0']
    %21 = vsyncpa [#allocation8], 0
    %s22 = scalar_lea.sflag [#allocation8], 1
    %23 = vsyncpa %s22, 0
    %24 = vsyncpa [#allocation11], 0
    %s25 = scalar_lea.sflag [#allocation11], 1
    %26 = vsyncpa %s25, 0
    %27 = vsyncpa [#allocation9], 0
    %s28 = scalar_lea.sflag [#allocation9], 1
    %29 = vsyncpa %s28, 0
    loop: start=0, step=1, limit=14
    $region2: #{tpu_custom_call.1} parent=1 // loop_pre_header
      _
    $region3: #{tpu_custom_call.1} parent=1 // loop_header
      %s31 = sphi 0, %s35
      %p32 = scmp.ge.s32.totalorder %s31, 14
      %s38 = sphi 0, %s50
      %s39 = sphi 0, %s46
      %s40 = sphi 0, %s38
      %s41 = sphi 0, %s39
      %s42 = sphi 0, %s40
      %s43 = sphi 0, %s41
      %s53 = sphi 0, %s55
      %s56 = sphi 0, %s53
      %s57 = sphi 0, %s56
      %s73 = sphi 0, %s57
      %s77 = sphi 0, %s77
      %s79 = sphi 0, %s77
      %s80 = sphi 0, %s79
      %s94 = sphi 0, %s80
      %s98 = sphi 0, %s98
      %s100 = sphi 0, %s98
      %s101 = sphi 0, %s100
      %s115 = sphi 0, %s101
      %s121 = sphi 0, %s123
      %s124 = sphi 0, %s121
      %s125 = sphi 0, %s124
      %s141 = sphi 0, %s125
      %s147 = sphi 0, %s149
      %s150 = sphi 0, %s147
      %s151 = sphi 0, %s150
      %s167 = sphi 0, %s151
      %s171 = sphi 0, %s171
      %s173 = sphi 0, %s171
      %s174 = sphi 0, %s173
      %s188 = sphi 0, %s174
      %s192 = sphi 0, %s192
      %s194 = sphi 0, %s192
      %s195 = sphi 0, %s194
      %s209 = sphi 0, %s195
      %s213 = sphi 0, %s213
      %s215 = sphi 0, %s213
      %s216 = sphi 0, %s215
      %s230 = sphi 0, %s216
      %s234 = sphi 0, %s234
      %s236 = sphi 0, %s234
      %s237 = sphi 0, %s236
      %s251 = sphi 0, %s237
      %s257 = sphi 0, %s259
      %s260 = sphi 0, %s257
      %s261 = sphi 0, %s260
      %s277 = sphi 0, %s261
    $region4: #{tpu_custom_call.1} parent=1 // loop_header_branch
      %34 = sbr.rel (%p32) target = $region8
    $region5: #{tpu_custom_call.1} parent=1 // loop_body
      %s36 = ssub.s32 %s31, 1
      %s37 = ssub.s32 %s31, 2
      %s44 = sadd.s32 1, %s39
      %p45 = scmp.ge.s32.totalorder %s44, 6
      %s46 = scalar_select %p45, 0, %s44
      %s47 = sadd.s32 1, %s38
      %s48 = scalar_select %p45, %s47, %s38
      %p49 = scmp.ge.s32.totalorder %s48, 2
      %s50 = scalar_select %p49, 0, %s48
      %s51 = ssub.s32 %s38, %s50
      %p52 = scmp.eq.s32.totalorder %s51, 0
      %s54 = sadd.s32 %s53, 1
      %s55 = scalar_select %p52, %s53, %s54
      %p58 = pneg %p52
      %p59 = scmp.eq.s32.totalorder %s31, 11
      %p60 = por %p58, %p59
      %p61 = scmp.ne.s32.totalorder %s53, %s56
      %p62 = scmp.eq.s32.totalorder %s31, 0
      %p63 = por %p61, %p62
      %p64 = scmp.ne.s32.totalorder %s53, %s56
      %p65 = scmp.eq.s32.totalorder %s36, 11
      %p66 = por %p64, %p65
      %p67 = scmp.ne.s32.totalorder %s56, %s57
      %p68 = scmp.eq.s32.totalorder %s36, 0
      %p69 = por %p67, %p68
      %p70 = scmp.ne.s32.totalorder %s56, %s57
      %p71 = scmp.eq.s32.totalorder %s37, 11
      %p72 = por %p70, %p71
      %p74 = scmp.ne.s32.totalorder %s57, %s73
      %p75 = scmp.eq.s32.totalorder %s37, 0
      %p76 = por %p74, %p75
      %s78 = sadd.s32 %s77, 1
      %p81 = scmp.eq.s32.totalorder %s31, 11
      %p82 = scmp.ne.s32.totalorder %s77, %s79
      %p83 = scmp.eq.s32.totalorder %s31, 0
      %p84 = por %p82, %p83
      %p85 = scmp.ne.s32.totalorder %s77, %s79
      %p86 = scmp.eq.s32.totalorder %s36, 11
      %p87 = por %p85, %p86
      %p88 = scmp.ne.s32.totalorder %s79, %s80
      %p89 = scmp.eq.s32.totalorder %s36, 0
      %p90 = por %p88, %p89
      %p91 = scmp.ne.s32.totalorder %s79, %s80
      %p92 = scmp.eq.s32.totalorder %s37, 11
      %p93 = por %p91, %p92
      %p95 = scmp.ne.s32.totalorder %s80, %s94
      %p96 = scmp.eq.s32.totalorder %s37, 0
      %p97 = por %p95, %p96
      %s99 = sadd.s32 %s98, 1
      %p102 = scmp.eq.s32.totalorder %s31, 11
      %p103 = scmp.ne.s32.totalorder %s98, %s100
      %p104 = scmp.eq.s32.totalorder %s31, 0
      %p105 = por %p103, %p104
      %p106 = scmp.ne.s32.totalorder %s98, %s100
      %p107 = scmp.eq.s32.totalorder %s36, 11
      %p108 = por %p106, %p107
      %p109 = scmp.ne.s32.totalorder %s100, %s101
      %p110 = scmp.eq.s32.totalorder %s36, 0
      %p111 = por %p109, %p110
      %p112 = scmp.ne.s32.totalorder %s100, %s101
      %p113 = scmp.eq.s32.totalorder %s37, 11
      %p114 = por %p112, %p113
      %p116 = scmp.ne.s32.totalorder %s101, %s115
      %p117 = scmp.eq.s32.totalorder %s37, 0
      %p118 = por %p116, %p117
      %s119 = ssub.s32 %s39, %s46
      %p120 = scmp.eq.s32.totalorder %s119, 0
      %s122 = sadd.s32 %s121, 1
      %s123 = scalar_select %p120, %s121, %s122
      %p126 = pneg %p120
      %p127 = scmp.eq.s32.totalorder %s31, 11
      %p128 = por %p126, %p127
      %p129 = scmp.ne.s32.totalorder %s121, %s124
      %p130 = scmp.eq.s32.totalorder %s31, 0
      %p131 = por %p129, %p130
      %p132 = scmp.ne.s32.totalorder %s121, %s124
      %p133 = scmp.eq.s32.totalorder %s36, 11
      %p134 = por %p132, %p133
      %p135 = scmp.ne.s32.totalorder %s124, %s125
      %p136 = scmp.eq.s32.totalorder %s36, 0
      %p137 = por %p135, %p136
      %p138 = scmp.ne.s32.totalorder %s124, %s125
      %p139 = scmp.eq.s32.totalorder %s37, 11
      %p140 = por %p138, %p139
      %p142 = scmp.ne.s32.totalorder %s125, %s141
      %p143 = scmp.eq.s32.totalorder %s37, 0
      %p144 = por %p142, %p143
      %s145 = ssub.s32 %s39, %s46
      %p146 = scmp.eq.s32.totalorder %s145, 0
      %s148 = sadd.s32 %s147, 1
      %s149 = scalar_select %p146, %s147, %s148
      %p152 = pneg %p146
      %p153 = scmp.eq.s32.totalorder %s31, 11
      %p154 = por %p152, %p153
      %p155 = scmp.ne.s32.totalorder %s147, %s150
      %p156 = scmp.eq.s32.totalorder %s31, 0
      %p157 = por %p155, %p156
      %p158 = scmp.ne.s32.totalorder %s147, %s150
      %p159 = scmp.eq.s32.totalorder %s36, 11
      %p160 = por %p158, %p159
      %p161 = scmp.ne.s32.totalorder %s150, %s151
      %p162 = scmp.eq.s32.totalorder %s36, 0
      %p163 = por %p161, %p162
      %p164 = scmp.ne.s32.totalorder %s150, %s151
      %p165 = scmp.eq.s32.totalorder %s37, 11
      %p166 = por %p164, %p165
      %p168 = scmp.ne.s32.totalorder %s151, %s167
      %p169 = scmp.eq.s32.totalorder %s37, 0
      %p170 = por %p168, %p169
      %s172 = sadd.s32 %s171, 1
      %p175 = scmp.eq.s32.totalorder %s31, 11
      %p176 = scmp.ne.s32.totalorder %s171, %s173
      %p177 = scmp.eq.s32.totalorder %s31, 0
      %p178 = por %p176, %p177
      %p179 = scmp.ne.s32.totalorder %s171, %s173
      %p180 = scmp.eq.s32.totalorder %s36, 11
      %p181 = por %p179, %p180
      %p182 = scmp.ne.s32.totalorder %s173, %s174
      %p183 = scmp.eq.s32.totalorder %s36, 0
      %p184 = por %p182, %p183
      %p185 = scmp.ne.s32.totalorder %s173, %s174
      %p186 = scmp.eq.s32.totalorder %s37, 11
      %p187 = por %p185, %p186
      %p189 = scmp.ne.s32.totalorder %s174, %s188
      %p190 = scmp.eq.s32.totalorder %s37, 0
      %p191 = por %p189, %p190
      %s193 = sadd.s32 %s192, 1
      %p196 = scmp.eq.s32.totalorder %s31, 11
      %p197 = scmp.ne.s32.totalorder %s192, %s194
      %p198 = scmp.eq.s32.totalorder %s31, 0
      %p199 = por %p197, %p198
      %p200 = scmp.ne.s32.totalorder %s192, %s194
      %p201 = scmp.eq.s32.totalorder %s36, 11
      %p202 = por %p200, %p201
      %p203 = scmp.ne.s32.totalorder %s194, %s195
      %p204 = scmp.eq.s32.totalorder %s36, 0
      %p205 = por %p203, %p204
      %p206 = scmp.ne.s32.totalorder %s194, %s195
      %p207 = scmp.eq.s32.totalorder %s37, 11
      %p208 = por %p206, %p207
      %p210 = scmp.ne.s32.totalorder %s195, %s209
      %p211 = scmp.eq.s32.totalorder %s37, 0
      %p212 = por %p210, %p211
      %s214 = sadd.s32 %s213, 1
      %p217 = scmp.eq.s32.totalorder %s31, 11
      %p218 = scmp.ne.s32.totalorder %s213, %s215
      %p219 = scmp.eq.s32.totalorder %s31, 0
      %p220 = por %p218, %p219
      %p221 = scmp.ne.s32.totalorder %s213, %s215
      %p222 = scmp.eq.s32.totalorder %s36, 11
      %p223 = por %p221, %p222
      %p224 = scmp.ne.s32.totalorder %s215, %s216
      %p225 = scmp.eq.s32.totalorder %s36, 0
      %p226 = por %p224, %p225
      %p227 = scmp.ne.s32.totalorder %s215, %s216
      %p228 = scmp.eq.s32.totalorder %s37, 11
      %p229 = por %p227, %p228
      %p231 = scmp.ne.s32.totalorder %s216, %s230
      %p232 = scmp.eq.s32.totalorder %s37, 0
      %p233 = por %p231, %p232
      %s235 = sadd.s32 %s234, 1
      %p238 = scmp.eq.s32.totalorder %s31, 11
      %p239 = scmp.ne.s32.totalorder %s234, %s236
      %p240 = scmp.eq.s32.totalorder %s31, 0
      %p241 = por %p239, %p240
      %p242 = scmp.ne.s32.totalorder %s234, %s236
      %p243 = scmp.eq.s32.totalorder %s36, 11
      %p244 = por %p242, %p243
      %p245 = scmp.ne.s32.totalorder %s236, %s237
      %p246 = scmp.eq.s32.totalorder %s36, 0
      %p247 = por %p245, %p246
      %p248 = scmp.ne.s32.totalorder %s236, %s237
      %p249 = scmp.eq.s32.totalorder %s37, 11
      %p250 = por %p248, %p249
      %p252 = scmp.ne.s32.totalorder %s237, %s251
      %p253 = scmp.eq.s32.totalorder %s37, 0
      %p254 = por %p252, %p253
      %s255 = ssub.s32 %s38, %s50
      %p256 = scmp.eq.s32.totalorder %s255, 0
      %s258 = sadd.s32 %s257, 1
      %s259 = scalar_select %p256, %s257, %s258
      %p262 = pneg %p256
      %p263 = scmp.eq.s32.totalorder %s31, 11
      %p264 = por %p262, %p263
      %p265 = scmp.ne.s32.totalorder %s257, %s260
      %p266 = scmp.eq.s32.totalorder %s31, 0
      %p267 = por %p265, %p266
      %p268 = scmp.ne.s32.totalorder %s257, %s260
      %p269 = scmp.eq.s32.totalorder %s36, 11
      %p270 = por %p268, %p269
      %p271 = scmp.ne.s32.totalorder %s260, %s261
      %p272 = scmp.eq.s32.totalorder %s36, 0
      %p273 = por %p271, %p272
      %p274 = scmp.ne.s32.totalorder %s260, %s261
      %p275 = scmp.eq.s32.totalorder %s37, 11
      %p276 = por %p274, %p275
      %p278 = scmp.ne.s32.totalorder %s261, %s277
      %p279 = scmp.eq.s32.totalorder %s37, 0
      %p280 = por %p278, %p279
      %p281 = scmp.le.s32.totalorder 1, %s31
      %p282 = scmp.lt.s32.totalorder %s31, 13
      %p283 = pnand %p281, %p282
      %p284 = pneg %p283
      // Predicated region
      $region9: #{tpu_custom_call.1} parent=5 // pred_check
        _
      $region10: #{tpu_custom_call.1} parent=5 // pred_check_branch
        %286 = sbr.rel (%p283) target = $region12
      $region11: #{tpu_custom_call.1} parent=5 // pred_region
        %s287 = ssub.s32 %s31, 1
        // Predicated region
        $region13: #{tpu_custom_call.1} parent=11 // pred_check
          %p288 = pneg %p90
        $region14: #{tpu_custom_call.1} parent=11 // pred_check_branch
          %290 = sbr.rel (%p288) target = $region16
        $region15: #{tpu_custom_call.1} parent=11 // pred_region
          _
        $region16: #{tpu_custom_call.1} parent=11 // pred_fallthru
          _
        // Predicated region
        $region17: #{tpu_custom_call.1} parent=11 // pred_check
          %p291 = pneg %p111
        $region18: #{tpu_custom_call.1} parent=11 // pred_check_branch
          %293 = sbr.rel (%p291) target = $region20
        $region19: #{tpu_custom_call.1} parent=11 // pred_region
          _
        $region20: #{tpu_custom_call.1} parent=11 // pred_fallthru
          _
        // Predicated region
        $region21: #{tpu_custom_call.1} parent=11 // pred_check
          %p294 = pneg %p184
        $region22: #{tpu_custom_call.1} parent=11 // pred_check_branch
          %296 = sbr.rel (%p294) target = $region24
        $region23: #{tpu_custom_call.1} parent=11 // pred_region
          _
        $region24: #{tpu_custom_call.1} parent=11 // pred_fallthru
          _
        // Predicated region
        $region25: #{tpu_custom_call.1} parent=11 // pred_check
          %p297 = pneg %p205
        $region26: #{tpu_custom_call.1} parent=11 // pred_check_branch
          %299 = sbr.rel (%p297) target = $region28
        $region27: #{tpu_custom_call.1} parent=11 // pred_region
          _
        $region28: #{tpu_custom_call.1} parent=11 // pred_fallthru
          _
        // Predicated region
        $region29: #{tpu_custom_call.1} parent=11 // pred_check
          %p300 = pneg %p226
        $region30: #{tpu_custom_call.1} parent=11 // pred_check_branch
          %302 = sbr.rel (%p300) target = $region32
        $region31: #{tpu_custom_call.1} parent=11 // pred_region
          _
        $region32: #{tpu_custom_call.1} parent=11 // pred_fallthru
          _
        // Predicated region
        $region33: #{tpu_custom_call.1} parent=11 // pred_check
          %p303 = pneg %p247
        $region34: #{tpu_custom_call.1} parent=11 // pred_check_branch
          %305 = sbr.rel (%p303) target = $region36
        $region35: #{tpu_custom_call.1} parent=11 // pred_region
          _
        $region36: #{tpu_custom_call.1} parent=11 // pred_fallthru
          _
      $region12: #{tpu_custom_call.1} parent=5 // pred_fallthru
        _
      %p306 = scmp.lt.s32.totalorder %s31, 12
      // Predicated region
      $region37: #{tpu_custom_call.1} parent=5 // pred_check
        %p307 = pneg %p306
      $region38: #{tpu_custom_call.1} parent=5 // pred_check_branch
        %309 = sbr.rel (%p307) target = $region40
      $region39: #{tpu_custom_call.1} parent=5 // pred_region
        // Predicated region
        $region41: #{tpu_custom_call.1} parent=39 // pred_check
          %p310 = pneg %p63
        $region42: #{tpu_custom_call.1} parent=39 // pred_check_branch
          %312 = sbr.rel (%p310) target = $region44
        $region43: #{tpu_custom_call.1} parent=39 // pred_region
          %p313 = scmp.lt.s32.totalorder %s38, 1
          %s314 = scalar_select %p313, %s38, 1
          %s315 = smul.addr %s314, 8
          %s316 = smul.addr %s315, 8
          %s317 = scalar_lea.vmem %s1, %s316
        $region44: #{tpu_custom_call.1} parent=39 // pred_fallthru
          _
        // Predicated region
        $region45: #{tpu_custom_call.1} parent=39 // pred_check
          %p318 = pneg %p131
        $region46: #{tpu_custom_call.1} parent=39 // pred_check_branch
          %320 = sbr.rel (%p318) target = $region48
        $region47: #{tpu_custom_call.1} parent=39 // pred_region
          %s321 = sand.u32 %s121, 1
          %s322 = scalar_lea.sflag [#allocation8], %s321
          %s323 = sand.u32 %s121, 1
          %s324 = smul.addr %s323, 256
          %s325 = scalar_lea.vmem [#allocation7], %s324
          %s327 = ssub.s32 4096, 4096
          %328 = vsyncadd %s322, %s327
          %s329 = smul.addr %s39, 64
          %s330 = smul.addr %s329, 64
          %s331 = scalar_lea.hbm %s4, %s330
          %s332 = sshll.u32 %s325, 4
          %s333 = int_to_ptr.vmem [resolvable:$true] %s332
          %338 = dma.hbm_to_vmem [thread:$0]  %s331, 4096, %s333, %s322, 128, 128, 8
        $region48: #{tpu_custom_call.1} parent=39 // pred_fallthru
          _
        // Predicated region
        $region49: #{tpu_custom_call.1} parent=39 // pred_check
          %p339 = pneg %p157
        $region50: #{tpu_custom_call.1} parent=39 // pred_check_branch
          %341 = sbr.rel (%p339) target = $region52
        $region51: #{tpu_custom_call.1} parent=39 // pred_region
          %s342 = sand.u32 %s147, 1
          %s343 = scalar_lea.sflag [#allocation11], %s342
          %s344 = sand.u32 %s147, 1
          %s345 = smul.addr %s344, 128
          %s346 = scalar_lea.vmem [#allocation10], %s345
          %s348 = ssub.s32 2048, 2048
          %349 = vsyncadd %s343, %s348
          %s350 = smul.addr %s39, 32
          %s351 = smul.addr %s350, 64
          %s352 = scalar_lea.hbm %s5, %s351
          %s353 = sshll.u32 %s346, 4
          %s354 = int_to_ptr.vmem [resolvable:$true] %s353
          %359 = dma.hbm_to_vmem [thread:$0]  %s352, 2048, %s354, %s343, 128, 128, 8
        $region52: #{tpu_custom_call.1} parent=39 // pred_fallthru
          _
      $region40: #{tpu_custom_call.1} parent=5 // pred_fallthru
        _
      %p360 = scmp.le.s32.totalorder 1, %s31
      %p361 = scmp.lt.s32.totalorder %s31, 13
      %p362 = pnand %p360, %p361
      %p363 = pneg %p362
      // Predicated region
      $region53: #{tpu_custom_call.1} parent=5 // pred_check
        _
      $region54: #{tpu_custom_call.1} parent=5 // pred_check_branch
        %365 = sbr.rel (%p362) target = $region56
      $region55: #{tpu_custom_call.1} parent=5 // pred_region
        %s366 = ssub.s32 %s31, 1
        %s367 = sand.u32 %s124, 1
        %s368 = scalar_lea.sflag [#allocation8], %s367
        %s369 = sand.u32 %s124, 1
        %s370 = smul.addr %s369, 256
        %s371 = scalar_lea.vmem [#allocation7], %s370
        // Predicated region
        $region57: #{tpu_custom_call.1} parent=55 // pred_check
          %p372 = pneg %p137
        $region58: #{tpu_custom_call.1} parent=55 // pred_check_branch
          %374 = sbr.rel (%p372) target = $region60
        $region59: #{tpu_custom_call.1} parent=55 // pred_region
          %375 = dma.done %s368, 4096
        $region60: #{tpu_custom_call.1} parent=55 // pred_fallthru
          _
        %s376 = sand.u32 %s150, 1
        %s377 = scalar_lea.sflag [#allocation11], %s376
        %s378 = sand.u32 %s150, 1
        %s379 = smul.addr %s378, 128
        %s380 = scalar_lea.vmem [#allocation10], %s379
        // Predicated region
        $region61: #{tpu_custom_call.1} parent=55 // pred_check
          %p381 = pneg %p163
        $region62: #{tpu_custom_call.1} parent=55 // pred_check_branch
          %383 = sbr.rel (%p381) target = $region64
        $region63: #{tpu_custom_call.1} parent=55 // pred_region
          %384 = dma.done %s377, 2048
        $region64: #{tpu_custom_call.1} parent=55 // pred_fallthru
          _
        %p385 = scmp.lt.s32.totalorder %s40, 1
        %s386 = scalar_select %p385, %s40, 1
        %s387 = smul.addr %s386, 8
        %s388 = smul.addr %s387, 8
        %s389 = scalar_lea.vmem %s1, %s388
        %p390 = pneg %p69
        %p391 = pneg %p66
        %p392 = pneg %p90
        %p393 = pneg %p87
        %p394 = pneg %p111
        %p395 = pneg %p108
        %s396 = sand.u32 %s124, 1
        %s397 = scalar_lea.sflag [#allocation8], %s396
        %s398 = sand.u32 %s124, 1
        %s399 = smul.addr %s398, 256
        %s400 = scalar_lea.vmem [#allocation7], %s399
        %p401 = pneg %p137
        %p402 = pneg %p134
        %s403 = sand.u32 %s150, 1
        %s404 = scalar_lea.sflag [#allocation11], %s403
        %s405 = sand.u32 %s150, 1
        %s406 = smul.addr %s405, 128
        %s407 = scalar_lea.vmem [#allocation10], %s406
        %p408 = pneg %p163
        %p409 = pneg %p160
        %p410 = pneg %p184
        %p411 = pneg %p181
        %p412 = pneg %p205
        %p413 = pneg %p202
        %p414 = pneg %p226
        %p415 = pneg %p223
        %p416 = pneg %p247
        %p417 = pneg %p244
        %p418 = pneg %p273
        %p419 = pneg %p270
        %s420 = sand.u32 %s260, 1
        %s421 = scalar_lea.sflag [#allocation9], %s420
        %s422 = sand.u32 %s260, 1
        %s423 = smul.addr %s422, 64
        %s424 = scalar_lea.vmem [#allocation12], %s423
        %p425 = scmp.lt.s32.totalorder %s40, 1
        %s426 = scalar_select %p425, %s40, 1
        %s427 = smul.addr %s426, 8
        %s428 = smul.addr %s427, 8
        %s429 = scalar_lea.vmem %s1, %s428
        %p431 = scmp.eq.s32.totalorder %s41, 0
        // Predicated region
        $region65: #{tpu_custom_call.1} parent=55 // pred_check
          %p432 = pneg %p431
        $region66: #{tpu_custom_call.1} parent=55 // pred_check_branch
          %434 = sbr.rel (%p432) target = $region68
        $region67: #{tpu_custom_call.1} parent=55 // pred_region
          %v435 = vld [vmem:[%s429] sm:$0xff]
          %v436 = vld [vmem:[%s429 + $0x8] sm:$0xff]
          %v437 = vld [vmem:[%s429 + $0x10] sm:$0xff]
          %v438 = vld [vmem:[%s429 + $0x18] sm:$0xff]
          %v439 = vld [vmem:[%s429 + $0x20] sm:$0xff]
          %v440 = vld [vmem:[%s429 + $0x28] sm:$0xff]
          %v441 = vld [vmem:[%s429 + $0x30] sm:$0xff]
          %v442 = vld [vmem:[%s429 + $0x38] sm:$0xff]
          %v443 = vld [vmem:[%s2] sm:$0x1]
          %445 = vset.pattern.permute.xlu0 0
          %446 = vperm.xlu0 %445, %v435
          %v447 = vpop.permute.xlu0 %446
          %450 = vset.pattern.permute.xlu0 0
          %451 = vperm.xlu0 %450, %v436
          %v452 = vpop.permute.xlu0 %451
          %455 = vset.pattern.permute.xlu0 0
          %456 = vperm.xlu0 %455, %v437
          %v457 = vpop.permute.xlu0 %456
          %460 = vset.pattern.permute.xlu0 0
          %461 = vperm.xlu0 %460, %v438
          %v462 = vpop.permute.xlu0 %461
          %465 = vset.pattern.permute.xlu0 0
          %466 = vperm.xlu0 %465, %v439
          %v467 = vpop.permute.xlu0 %466
          %470 = vset.pattern.permute.xlu0 0
          %471 = vperm.xlu0 %470, %v440
          %v472 = vpop.permute.xlu0 %471
          %475 = vset.pattern.permute.xlu0 0
          %476 = vperm.xlu0 %475, %v441
          %v477 = vpop.permute.xlu0 %476
          %480 = vset.pattern.permute.xlu0 0
          %481 = vperm.xlu0 %480, %v442
          %v482 = vpop.permute.xlu0 %481
          %v485 = vlaneseq
          %v486 = vshrl.u32 %v485, 7
          %v487 = vsub.s32 0, %v486
          %v488 = vrot.slane %v443, %v487
          %v490 = vmul.f32 %v447, %v488
          %v491 = vmul.f32 %v452, %v488
          %v492 = vmul.f32 %v457, %v488
          %v493 = vmul.f32 %v462, %v488
          %v494 = vmul.f32 %v467, %v488
          %v495 = vmul.f32 %v472, %v488
          %v496 = vmul.f32 %v477, %v488
          %v497 = vmul.f32 %v482, %v488
          %v498 = vld [vmem:[%s3] sm:$0x1]
          %v500 = vlaneseq
          %v501 = vshrl.u32 %v500, 7
          %v502 = vsub.s32 0, %v501
          %v503 = vrot.slane %v498, %v502
          %v505 = vadd.f32 %v490, %v503
          %v506 = vadd.f32 %v491, %v503
          %v507 = vadd.f32 %v492, %v503
          %v508 = vadd.f32 %v493, %v503
          %v509 = vadd.f32 %v494, %v503
          %v510 = vadd.f32 %v495, %v503
          %v511 = vadd.f32 %v496, %v503
          %v512 = vadd.f32 %v497, %v503
          %513 = vst [vmem:[#allocation2] sm:$0xff] %v505
          %514 = vst [vmem:[#allocation2 + $0x8] sm:$0xff] %v506
          %515 = vst [vmem:[#allocation2 + $0x10] sm:$0xff] %v507
          %516 = vst [vmem:[#allocation2 + $0x18] sm:$0xff] %v508
          %517 = vst [vmem:[#allocation2 + $0x20] sm:$0xff] %v509
          %518 = vst [vmem:[#allocation2 + $0x28] sm:$0xff] %v510
          %519 = vst [vmem:[#allocation2 + $0x30] sm:$0xff] %v511
          %520 = vst [vmem:[#allocation2 + $0x38] sm:$0xff] %v512
          %521 = vst [vmem:[#allocation3] sm:$0xff] 0.0
          %522 = vst [vmem:[#allocation3 + $0x8] sm:$0xff] 0.0
          %523 = vst [vmem:[#allocation3 + $0x10] sm:$0xff] 0.0
          %524 = vst [vmem:[#allocation3 + $0x18] sm:$0xff] 0.0
          %525 = vst [vmem:[#allocation3 + $0x20] sm:$0xff] 0.0
          %526 = vst [vmem:[#allocation3 + $0x28] sm:$0xff] 0.0
          %527 = vst [vmem:[#allocation3 + $0x30] sm:$0xff] 0.0
          %528 = vst [vmem:[#allocation3 + $0x38] sm:$0xff] 0.0
        $region68: #{tpu_custom_call.1} parent=55 // pred_fallthru
          _
        %v529 = vld [vmem:[#allocation2] sm:$0xff]
        %v530 = vld [vmem:[#allocation2 + $0x8] sm:$0xff]
        %v531 = vld [vmem:[#allocation2 + $0x10] sm:$0xff]
        %v532 = vld [vmem:[#allocation2 + $0x18] sm:$0xff]
        %v533 = vld [vmem:[#allocation2 + $0x20] sm:$0xff]
        %v534 = vld [vmem:[#allocation2 + $0x28] sm:$0xff]
        %v535 = vld [vmem:[#allocation2 + $0x30] sm:$0xff]
        %v536 = vld [vmem:[#allocation2 + $0x38] sm:$0xff]
        %s537 = sld [smem:[#allocation6 + %s41]]
        %v538 = vlaneseq
        %v539 = vshrl.u32 %v538, 7
        %v540 = vadd.s32 %v539, 8
        %v541 = vadd.s32 %v539, 16
        %v542 = vadd.s32 %v539, 24
        %v543 = vadd.s32 %v539, 32
        %v544 = vadd.s32 %v539, 40
        %v545 = vadd.s32 %v539, 48
        %v546 = vadd.s32 %v539, 56
        %p547 = scmp.eq.s32.totalorder %s537, 1
        // Predicated region
        $region69: #{tpu_custom_call.1} parent=55 // pred_check
          %p548 = pneg %p547
        $region70: #{tpu_custom_call.1} parent=55 // pred_check_branch
          %550 = sbr.rel (%p548) target = $region72
        $region71: #{tpu_custom_call.1} parent=55 // pred_region
          %vm551 = vcmp.ge.s32.totalorder %v539, 1
          %vm552 = vcmp.ge.s32.totalorder %v540, 1
          %vm553 = vcmp.ge.s32.totalorder %v541, 1
          %vm554 = vcmp.ge.s32.totalorder %v542, 1
          %vm555 = vcmp.ge.s32.totalorder %v543, 1
          %vm556 = vcmp.ge.s32.totalorder %v544, 1
          %vm557 = vcmp.ge.s32.totalorder %v545, 1
          %vm558 = vcmp.ge.s32.totalorder %v546, 1
          %v560 = vrot.slane %v536, 7
          %vm569 = vcmask 1040384
          %v570 = vrot.slane %v529, 7
          %v571 = vrot.slane %v530, 7
          %v572 = vsel %vm569, %v570, %v571
          %v573 = vrot.slane %v531, 7
          %v574 = vsel %vm569, %v571, %v573
          %v575 = vrot.slane %v532, 7
          %v576 = vsel %vm569, %v573, %v575
          %v577 = vrot.slane %v533, 7
          %v578 = vsel %vm569, %v575, %v577
          %v579 = vrot.slane %v534, 7
          %v580 = vsel %vm569, %v577, %v579
          %v581 = vrot.slane %v535, 7
          %v582 = vsel %vm569, %v579, %v581
          %v583 = vsel %vm569, %v581, %v560
          %v592 = vsel %vm569, %v560, %v570
          %v593 = vsel %vm551, 1, 0
          %v594 = vsel %vm552, 1, 0
          %v595 = vsel %vm553, 1, 0
          %v596 = vsel %vm554, 1, 0
          %v597 = vsel %vm555, 1, 0
          %v598 = vsel %vm556, 1, 0
          %v599 = vsel %vm557, 1, 0
          %v600 = vsel %vm558, 1, 0
          %vm601 = vcmp.eq.s32.totalorder %v593, 1
          %vm602 = vcmp.eq.s32.totalorder %v594, 1
          %vm603 = vcmp.eq.s32.totalorder %v595, 1
          %vm604 = vcmp.eq.s32.totalorder %v596, 1
          %vm605 = vcmp.eq.s32.totalorder %v597, 1
          %vm606 = vcmp.eq.s32.totalorder %v598, 1
          %vm607 = vcmp.eq.s32.totalorder %v599, 1
          %vm608 = vcmp.eq.s32.totalorder %v600, 1
          %v609 = vsel %vm601, %v592, 0.0
          %v610 = vsel %vm602, %v572, 0.0
          %v611 = vsel %vm603, %v574, 0.0
          %v612 = vsel %vm604, %v576, 0.0
          %v613 = vsel %vm605, %v578, 0.0
          %v614 = vsel %vm606, %v580, 0.0
          %v615 = vsel %vm607, %v582, 0.0
          %v616 = vsel %vm608, %v583, 0.0
          %617 = vst [vmem:[#allocation4] sm:$0xff] %v609
          %618 = vst [vmem:[#allocation4 + $0x8] sm:$0xff] %v610
          %619 = vst [vmem:[#allocation4 + $0x10] sm:$0xff] %v611
          %620 = vst [vmem:[#allocation4 + $0x18] sm:$0xff] %v612
          %621 = vst [vmem:[#allocation4 + $0x20] sm:$0xff] %v613
          %622 = vst [vmem:[#allocation4 + $0x28] sm:$0xff] %v614
          %623 = vst [vmem:[#allocation4 + $0x30] sm:$0xff] %v615
          %624 = vst [vmem:[#allocation4 + $0x38] sm:$0xff] %v616
        $region72: #{tpu_custom_call.1} parent=55 // pred_fallthru
          _
        %p625 = scmp.eq.s32.totalorder %s537, 2
        // Predicated region
        $region73: #{tpu_custom_call.1} parent=55 // pred_check
          %p626 = pneg %p625
        $region74: #{tpu_custom_call.1} parent=55 // pred_check_branch
          %628 = sbr.rel (%p626) target = $region76
        $region75: #{tpu_custom_call.1} parent=55 // pred_region
          %vm629 = vcmp.ge.s32.totalorder %v539, 2
          %vm630 = vcmp.ge.s32.totalorder %v540, 2
          %vm631 = vcmp.ge.s32.totalorder %v541, 2
          %vm632 = vcmp.ge.s32.totalorder %v542, 2
          %vm633 = vcmp.ge.s32.totalorder %v543, 2
          %vm634 = vcmp.ge.s32.totalorder %v544, 2
          %vm635 = vcmp.ge.s32.totalorder %v545, 2
          %vm636 = vcmp.ge.s32.totalorder %v546, 2
          %v638 = vrot.slane %v536, 6
          %vm647 = vcmask 1041408
          %v648 = vrot.slane %v529, 6
          %v649 = vrot.slane %v530, 6
          %v650 = vsel %vm647, %v648, %v649
          %v651 = vrot.slane %v531, 6
          %v652 = vsel %vm647, %v649, %v651
          %v653 = vrot.slane %v532, 6
          %v654 = vsel %vm647, %v651, %v653
          %v655 = vrot.slane %v533, 6
          %v656 = vsel %vm647, %v653, %v655
          %v657 = vrot.slane %v534, 6
          %v658 = vsel %vm647, %v655, %v657
          %v659 = vrot.slane %v535, 6
          %v660 = vsel %vm647, %v657, %v659
          %v661 = vsel %vm647, %v659, %v638
          %v670 = vsel %vm647, %v638, %v648
          %v671 = vsel %vm629, 1, 0
          %v672 = vsel %vm630, 1, 0
          %v673 = vsel %vm631, 1, 0
          %v674 = vsel %vm632, 1, 0
          %v675 = vsel %vm633, 1, 0
          %v676 = vsel %vm634, 1, 0
          %v677 = vsel %vm635, 1, 0
          %v678 = vsel %vm636, 1, 0
          %vm679 = vcmp.eq.s32.totalorder %v671, 1
          %vm680 = vcmp.eq.s32.totalorder %v672, 1
          %vm681 = vcmp.eq.s32.totalorder %v673, 1
          %vm682 = vcmp.eq.s32.totalorder %v674, 1
          %vm683 = vcmp.eq.s32.totalorder %v675, 1
          %vm684 = vcmp.eq.s32.totalorder %v676, 1
          %vm685 = vcmp.eq.s32.totalorder %v677, 1
          %vm686 = vcmp.eq.s32.totalorder %v678, 1
          %v687 = vsel %vm679, %v670, 0.0
          %v688 = vsel %vm680, %v650, 0.0
          %v689 = vsel %vm681, %v652, 0.0
          %v690 = vsel %vm682, %v654, 0.0
          %v691 = vsel %vm683, %v656, 0.0
          %v692 = vsel %vm684, %v658, 0.0
          %v693 = vsel %vm685, %v660, 0.0
          %v694 = vsel %vm686, %v661, 0.0
          %695 = vst [vmem:[#allocation4] sm:$0xff] %v687
          %696 = vst [vmem:[#allocation4 + $0x8] sm:$0xff] %v688
          %697 = vst [vmem:[#allocation4 + $0x10] sm:$0xff] %v689
          %698 = vst [vmem:[#allocation4 + $0x18] sm:$0xff] %v690
          %699 = vst [vmem:[#allocation4 + $0x20] sm:$0xff] %v691
          %700 = vst [vmem:[#allocation4 + $0x28] sm:$0xff] %v692
          %701 = vst [vmem:[#allocation4 + $0x30] sm:$0xff] %v693
          %702 = vst [vmem:[#allocation4 + $0x38] sm:$0xff] %v694
        $region76: #{tpu_custom_call.1} parent=55 // pred_fallthru
          _
        %p703 = scmp.eq.s32.totalorder %s537, 4
        // Predicated region
        $region77: #{tpu_custom_call.1} parent=55 // pred_check
          %p704 = pneg %p703
        $region78: #{tpu_custom_call.1} parent=55 // pred_check_branch
          %706 = sbr.rel (%p704) target = $region80
        $region79: #{tpu_custom_call.1} parent=55 // pred_region
          %vm707 = vcmp.ge.s32.totalorder %v539, 4
          %vm708 = vcmp.ge.s32.totalorder %v540, 4
          %vm709 = vcmp.ge.s32.totalorder %v541, 4
          %vm710 = vcmp.ge.s32.totalorder %v542, 4
          %vm711 = vcmp.ge.s32.totalorder %v543, 4
          %vm712 = vcmp.ge.s32.totalorder %v544, 4
          %vm713 = vcmp.ge.s32.totalorder %v545, 4
          %vm714 = vcmp.ge.s32.totalorder %v546, 4
          %v716 = vrot.slane %v536, 4
          %vm725 = vcmask 1043456
          %v726 = vrot.slane %v529, 4
          %v727 = vrot.slane %v530, 4
          %v728 = vsel %vm725, %v726, %v727
          %v729 = vrot.slane %v531, 4
          %v730 = vsel %vm725, %v727, %v729
          %v731 = vrot.slane %v532, 4
          %v732 = vsel %vm725, %v729, %v731
          %v733 = vrot.slane %v533, 4
          %v734 = vsel %vm725, %v731, %v733
          %v735 = vrot.slane %v534, 4
          %v736 = vsel %vm725, %v733, %v735
          %v737 = vrot.slane %v535, 4
          %v738 = vsel %vm725, %v735, %v737
          %v739 = vsel %vm725, %v737, %v716
          %v748 = vsel %vm725, %v716, %v726
          %v749 = vsel %vm707, 1, 0
          %v750 = vsel %vm708, 1, 0
          %v751 = vsel %vm709, 1, 0
          %v752 = vsel %vm710, 1, 0
          %v753 = vsel %vm711, 1, 0
          %v754 = vsel %vm712, 1, 0
          %v755 = vsel %vm713, 1, 0
          %v756 = vsel %vm714, 1, 0
          %vm757 = vcmp.eq.s32.totalorder %v749, 1
          %vm758 = vcmp.eq.s32.totalorder %v750, 1
          %vm759 = vcmp.eq.s32.totalorder %v751, 1
          %vm760 = vcmp.eq.s32.totalorder %v752, 1
          %vm761 = vcmp.eq.s32.totalorder %v753, 1
          %vm762 = vcmp.eq.s32.totalorder %v754, 1
          %vm763 = vcmp.eq.s32.totalorder %v755, 1
          %vm764 = vcmp.eq.s32.totalorder %v756, 1
          %v765 = vsel %vm757, %v748, 0.0
          %v766 = vsel %vm758, %v728, 0.0
          %v767 = vsel %vm759, %v730, 0.0
          %v768 = vsel %vm760, %v732, 0.0
          %v769 = vsel %vm761, %v734, 0.0
          %v770 = vsel %vm762, %v736, 0.0
          %v771 = vsel %vm763, %v738, 0.0
          %v772 = vsel %vm764, %v739, 0.0
          %773 = vst [vmem:[#allocation4] sm:$0xff] %v765
          %774 = vst [vmem:[#allocation4 + $0x8] sm:$0xff] %v766
          %775 = vst [vmem:[#allocation4 + $0x10] sm:$0xff] %v767
          %776 = vst [vmem:[#allocation4 + $0x18] sm:$0xff] %v768
          %777 = vst [vmem:[#allocation4 + $0x20] sm:$0xff] %v769
          %778 = vst [vmem:[#allocation4 + $0x28] sm:$0xff] %v770
          %779 = vst [vmem:[#allocation4 + $0x30] sm:$0xff] %v771
          %780 = vst [vmem:[#allocation4 + $0x38] sm:$0xff] %v772
        $region80: #{tpu_custom_call.1} parent=55 // pred_fallthru
          _
        %v781 = vld [vmem:[#allocation4] sm:$0xff]
        %v782 = vld [vmem:[#allocation4 + $0x8] sm:$0xff]
        %v783 = vld [vmem:[#allocation4 + $0x10] sm:$0xff]
        %v784 = vld [vmem:[#allocation4 + $0x18] sm:$0xff]
        %v785 = vld [vmem:[#allocation4 + $0x20] sm:$0xff]
        %v786 = vld [vmem:[#allocation4 + $0x28] sm:$0xff]
        %v787 = vld [vmem:[#allocation4 + $0x30] sm:$0xff]
        %v788 = vld [vmem:[#allocation4 + $0x38] sm:$0xff]
        %v789 = vpack.c.bf16 %v782, %v781
        %v790 = vpack.c.bf16 %v784, %v783
        %v791 = vpack.c.bf16 %v786, %v785
        %v792 = vpack.c.bf16 %v788, %v787
        %v793 = vpack.c.bf16 %v530, %v529
        %v794 = vpack.c.bf16 %v532, %v531
        %v795 = vpack.c.bf16 %v534, %v533
        %v796 = vpack.c.bf16 %v536, %v535
        %v797 = vld [vmem:[%s371] sm:$0xff]
        %v798 = vld [vmem:[%s371 + $0x8] sm:$0xff]
        %v799 = vld [vmem:[%s371 + $0x10] sm:$0xff]
        %v800 = vld [vmem:[%s371 + $0x18] sm:$0xff]
        %v801 = vld [vmem:[%s371 + $0x20] sm:$0xff]
        %v802 = vld [vmem:[%s371 + $0x28] sm:$0xff]
        %v803 = vld [vmem:[%s371 + $0x30] sm:$0xff]
        %v804 = vld [vmem:[%s371 + $0x38] sm:$0xff]
        %v805 = vld [vmem:[%s371 + $0x40] sm:$0xff]
        %v806 = vld [vmem:[%s371 + $0x48] sm:$0xff]
        %v807 = vld [vmem:[%s371 + $0x50] sm:$0xff]
        %v808 = vld [vmem:[%s371 + $0x58] sm:$0xff]
        %v809 = vld [vmem:[%s371 + $0x60] sm:$0xff]
        %v810 = vld [vmem:[%s371 + $0x68] sm:$0xff]
        %v811 = vld [vmem:[%s371 + $0x70] sm:$0xff]
        %v812 = vld [vmem:[%s371 + $0x78] sm:$0xff]
        %v813 = vld [vmem:[%s371 + $0x80] sm:$0xff]
        %v814 = vld [vmem:[%s371 + $0x88] sm:$0xff]
        %v815 = vld [vmem:[%s371 + $0x90] sm:$0xff]
        %v816 = vld [vmem:[%s371 + $0x98] sm:$0xff]
        %v817 = vld [vmem:[%s371 + $0xa0] sm:$0xff]
        %v818 = vld [vmem:[%s371 + $0xa8] sm:$0xff]
        %v819 = vld [vmem:[%s371 + $0xb0] sm:$0xff]
        %v820 = vld [vmem:[%s371 + $0xb8] sm:$0xff]
        %v821 = vld [vmem:[%s371 + $0xc0] sm:$0xff]
        %v822 = vld [vmem:[%s371 + $0xc8] sm:$0xff]
        %v823 = vld [vmem:[%s371 + $0xd0] sm:$0xff]
        %v824 = vld [vmem:[%s371 + $0xd8] sm:$0xff]
        %v825 = vld [vmem:[%s371 + $0xe0] sm:$0xff]
        %v826 = vld [vmem:[%s371 + $0xe8] sm:$0xff]
        %v827 = vld [vmem:[%s371 + $0xf0] sm:$0xff]
        %v828 = vld [vmem:[%s371 + $0xf8] sm:$0xff]
        %v861 = vunpack.c.l.b16 %v797
        %v862 = vunpack.c.h.b16 %v797
        %v863 = vunpack.c.l.b16 %v798
        %v864 = vunpack.c.h.b16 %v798
        %v865 = vunpack.c.l.b16 %v799
        %v866 = vunpack.c.h.b16 %v799
        %v867 = vunpack.c.l.b16 %v800
        %v868 = vunpack.c.h.b16 %v800
        %v869 = vunpack.c.l.b16 %v801
        %v870 = vunpack.c.h.b16 %v801
        %v871 = vunpack.c.l.b16 %v802
        %v872 = vunpack.c.h.b16 %v802
        %v873 = vunpack.c.l.b16 %v803
        %v874 = vunpack.c.h.b16 %v803
        %v875 = vunpack.c.l.b16 %v804
        %v876 = vunpack.c.h.b16 %v804
        %v877 = vunpack.c.l.b16 %v805
        %v878 = vunpack.c.h.b16 %v805
        %v879 = vunpack.c.l.b16 %v806
        %v880 = vunpack.c.h.b16 %v806
        %v881 = vunpack.c.l.b16 %v807
        %v882 = vunpack.c.h.b16 %v807
        %v883 = vunpack.c.l.b16 %v808
        %v884 = vunpack.c.h.b16 %v808
        %v885 = vunpack.c.l.b16 %v809
        %v886 = vunpack.c.h.b16 %v809
        %v887 = vunpack.c.l.b16 %v810
        %v888 = vunpack.c.h.b16 %v810
        %v889 = vunpack.c.l.b16 %v811
        %v890 = vunpack.c.h.b16 %v811
        %v891 = vunpack.c.l.b16 %v812
        %v892 = vunpack.c.h.b16 %v812
        %v893 = vunpack.c.l.b16 %v813
        %v894 = vunpack.c.h.b16 %v813
        %v895 = vunpack.c.l.b16 %v814
        %v896 = vunpack.c.h.b16 %v814
        %v897 = vunpack.c.l.b16 %v815
        %v898 = vunpack.c.h.b16 %v815
        %v899 = vunpack.c.l.b16 %v816
        %v900 = vunpack.c.h.b16 %v816
        %v901 = vunpack.c.l.b16 %v817
        %v902 = vunpack.c.h.b16 %v817
        %v903 = vunpack.c.l.b16 %v818
        %v904 = vunpack.c.h.b16 %v818
        %v905 = vunpack.c.l.b16 %v819
        %v906 = vunpack.c.h.b16 %v819
        %v907 = vunpack.c.l.b16 %v820
        %v908 = vunpack.c.h.b16 %v820
        %v909 = vunpack.c.l.b16 %v821
        %v910 = vunpack.c.h.b16 %v821
        %v911 = vunpack.c.l.b16 %v822
        %v912 = vunpack.c.h.b16 %v822
        %v913 = vunpack.c.l.b16 %v823
        %v914 = vunpack.c.h.b16 %v823
        %v915 = vunpack.c.l.b16 %v824
        %v916 = vunpack.c.h.b16 %v824
        %v917 = vunpack.c.l.b16 %v825
        %v918 = vunpack.c.h.b16 %v825
        %v919 = vunpack.c.l.b16 %v826
        %v920 = vunpack.c.h.b16 %v826
        %v921 = vunpack.c.l.b16 %v827
        %v922 = vunpack.c.h.b16 %v827
        %v923 = vunpack.c.l.b16 %v828
        %v924 = vunpack.c.h.b16 %v828
        %v925 = vpack.c.b16 %v863, %v861
        %v926 = vpack.c.b16 %v864, %v862
        %v927 = vpack.c.b16 %v867, %v865
        %v928 = vpack.c.b16 %v868, %v866
        %v929 = vpack.c.b16 %v871, %v869
        %v930 = vpack.c.b16 %v872, %v870
        %v931 = vpack.c.b16 %v875, %v873
        %v932 = vpack.c.b16 %v876, %v874
        %v933 = vpack.c.b16 %v879, %v877
        %v934 = vpack.c.b16 %v880, %v878
        %v935 = vpack.c.b16 %v883, %v881
        %v936 = vpack.c.b16 %v884, %v882
        %v937 = vpack.c.b16 %v887, %v885
        %v938 = vpack.c.b16 %v888, %v886
        %v939 = vpack.c.b16 %v891, %v889
        %v940 = vpack.c.b16 %v892, %v890
        %v941 = vpack.c.b16 %v895, %v893
        %v942 = vpack.c.b16 %v896, %v894
        %v943 = vpack.c.b16 %v899, %v897
        %v944 = vpack.c.b16 %v900, %v898
        %v945 = vpack.c.b16 %v903, %v901
        %v946 = vpack.c.b16 %v904, %v902
        %v947 = vpack.c.b16 %v907, %v905
        %v948 = vpack.c.b16 %v908, %v906
        %v949 = vpack.c.b16 %v911, %v909
        %v950 = vpack.c.b16 %v912, %v910
        %v951 = vpack.c.b16 %v915, %v913
        %v952 = vpack.c.b16 %v916, %v914
        %v953 = vpack.c.b16 %v919, %v917
        %v954 = vpack.c.b16 %v920, %v918
        %v955 = vpack.c.b16 %v923, %v921
        %v956 = vpack.c.b16 %v924, %v922
        %989 = vmatprep.subr.bf16.mxu0 %v940
        %990 = vmatpush1.bf16.msra.mxu0 %v939
        %991 = vmatprep.subr.bf16.mxu0 %v938
        %992 = vmatpush1.bf16.msra.mxu0 %v937
        %993 = vmatprep.subr.bf16.mxu0 %v936
        %994 = vmatpush1.bf16.msra.mxu0 %v935
        %995 = vmatprep.subr.bf16.mxu0 %v934
        %996 = vmatpush1.bf16.msra.mxu0 %v933
        %997 = vmatprep.subr.bf16.mxu0 %v932
        %998 = vmatpush1.bf16.msra.mxu0 %v931
        %999 = vmatprep.subr.bf16.mxu0 %v930
        %1000 = vmatpush1.bf16.msra.mxu0 %v929
        %1001 = vmatprep.subr.bf16.mxu0 %v928
        %1002 = vmatpush1.bf16.msra.mxu0 %v927
        %1003 = vmatprep.subr.bf16.mxu0 %v926
        %1004 = vmatpush1.bf16.msra.mxu0 %v925
        %1005 = vmatprep.subr.bf16.mxu0 %v956
        %1006 = vmatpush2.bf16.msra.mxu0 %v955
        %1007 = vmatprep.subr.bf16.mxu0 %v954
        %1008 = vmatpush2.bf16.msra.mxu0 %v953
        %1009 = vmatprep.subr.bf16.mxu0 %v952
        %1010 = vmatpush2.bf16.msra.mxu0 %v951
        %1011 = vmatprep.subr.bf16.mxu0 %v950
        %1012 = vmatpush2.bf16.msra.mxu0 %v949
        %1013 = vmatprep.subr.bf16.mxu0 %v948
        %1014 = vmatpush2.bf16.msra.mxu0 %v947
        %1015 = vmatprep.subr.bf16.mxu0 %v946
        %1016 = vmatpush2.bf16.msra.mxu0 %v945
        %1017 = vmatprep.subr.bf16.mxu0 %v944
        %1018 = vmatpush2.bf16.msra.mxu0 %v943
        %1019 = vmatprep.subr.bf16.mxu0 %v942
        %1020 = vmatpush2.bf16.msra.mxu0 %v941
        %1021 = vmatprep.mubr.bf16.mxu0 %v793
        %1022 = vmatmul.mubr.bf16.gmra.mxu0 %v789
        %v1023 = vpop.f32.mrf.mxu0
        %v1024 = vadd.f32 0.0, %v1023
        %v1025 = vpop.f32.mrf.mxu0
        %v1026 = vadd.f32 0.0, %v1025
        %v1027 = vpop.f32.mrf.mxu0
        %v1028 = vadd.f32 0.0, %v1027
        %v1029 = vpop.f32.mrf.mxu0
        %v1030 = vadd.f32 0.0, %v1029
        %1031 = vmatprep.mubr.bf16.mxu0 %v794
        %1032 = vmatmul.mubr.bf16.gmra.mxu0 %v790
        %v1033 = vpop.f32.mrf.mxu0
        %v1034 = vadd.f32 0.0, %v1033
        %v1035 = vpop.f32.mrf.mxu0
        %v1036 = vadd.f32 0.0, %v1035
        %v1037 = vpop.f32.mrf.mxu0
        %v1038 = vadd.f32 0.0, %v1037
        %v1039 = vpop.f32.mrf.mxu0
        %v1040 = vadd.f32 0.0, %v1039
        %1041 = vmatprep.mubr.bf16.mxu0 %v795
        %1042 = vmatmul.mubr.bf16.gmra.mxu0 %v791
        %v1043 = vpop.f32.mrf.mxu0
        %v1044 = vadd.f32 0.0, %v1043
        %v1045 = vpop.f32.mrf.mxu0
        %v1046 = vadd.f32 0.0, %v1045
        %v1047 = vpop.f32.mrf.mxu0
        %v1048 = vadd.f32 0.0, %v1047
        %v1049 = vpop.f32.mrf.mxu0
        %v1050 = vadd.f32 0.0, %v1049
        %1051 = vmatprep.mubr.bf16.mxu0 %v796
        %1052 = vmatmul.mubr.bf16.gmra.mxu0 %v792
        %v1053 = vpop.f32.mrf.mxu0
        %v1054 = vadd.f32 0.0, %v1053
        %v1055 = vpop.f32.mrf.mxu0
        %v1056 = vadd.f32 0.0, %v1055
        %v1057 = vpop.f32.mrf.mxu0
        %v1058 = vadd.f32 0.0, %v1057
        %v1059 = vpop.f32.mrf.mxu0
        %v1060 = vadd.f32 0.0, %v1059
        %1061 = vdwg.mxu0
        %v1062 = vtanh.pop %v1024
        %v1063 = vtanh.pop %v1028
        %v1064 = vtanh.pop %v1034
        %v1065 = vtanh.pop %v1038
        %v1066 = vtanh.pop %v1044
        %v1067 = vtanh.pop %v1048
        %v1068 = vtanh.pop %v1054
        %v1069 = vtanh.pop %v1058
        %v1070 = vxor.u32 %v1026, 2147483648
        %v1071 = vxor.u32 %v1030, 2147483648
        %v1072 = vxor.u32 %v1036, 2147483648
        %v1073 = vxor.u32 %v1040, 2147483648
        %v1074 = vxor.u32 %v1046, 2147483648
        %v1075 = vxor.u32 %v1050, 2147483648
        %v1076 = vxor.u32 %v1056, 2147483648
        %v1077 = vxor.u32 %v1060, 2147483648
        %v1078 = vmul.f32 %v1070, 1.442695
        %v1079 = vpow.pop %v1078
        %v1080 = vmul.f32 %v1071, 1.442695
        %v1081 = vpow.pop %v1080
        %v1082 = vmul.f32 %v1072, 1.442695
        %v1083 = vpow.pop %v1082
        %v1084 = vmul.f32 %v1073, 1.442695
        %v1085 = vpow.pop %v1084
        %v1086 = vmul.f32 %v1074, 1.442695
        %v1087 = vpow.pop %v1086
        %v1088 = vmul.f32 %v1075, 1.442695
        %v1089 = vpow.pop %v1088
        %v1090 = vmul.f32 %v1076, 1.442695
        %v1091 = vpow.pop %v1090
        %v1092 = vmul.f32 %v1077, 1.442695
        %v1093 = vpow.pop %v1092
        %v1094 = vadd.f32 %v1079, 1.0
        %v1095 = vadd.f32 %v1081, 1.0
        %v1096 = vadd.f32 %v1083, 1.0
        %v1097 = vadd.f32 %v1085, 1.0
        %v1098 = vadd.f32 %v1087, 1.0
        %v1099 = vadd.f32 %v1089, 1.0
        %v1100 = vadd.f32 %v1091, 1.0
        %v1101 = vadd.f32 %v1093, 1.0
        %v1102 = vrcp.pop %v1094
        %v1103 = vmul.f32 1.0, %v1102
        %v1104 = vrcp.pop %v1095
        %v1105 = vmul.f32 1.0, %v1104
        %v1106 = vrcp.pop %v1096
        %v1107 = vmul.f32 1.0, %v1106
        %v1108 = vrcp.pop %v1097
        %v1109 = vmul.f32 1.0, %v1108
        %v1110 = vrcp.pop %v1098
        %v1111 = vmul.f32 1.0, %v1110
        %v1112 = vrcp.pop %v1099
        %v1113 = vmul.f32 1.0, %v1112
        %v1114 = vrcp.pop %v1100
        %v1115 = vmul.f32 1.0, %v1114
        %v1116 = vrcp.pop %v1101
        %v1117 = vmul.f32 1.0, %v1116
        %v1118 = vmul.f32 %v1062, %v1103
        %v1119 = vmul.f32 %v1063, %v1105
        %v1120 = vmul.f32 %v1064, %v1107
        %v1121 = vmul.f32 %v1065, %v1109
        %v1122 = vmul.f32 %v1066, %v1111
        %v1123 = vmul.f32 %v1067, %v1113
        %v1124 = vmul.f32 %v1068, %v1115
        %v1125 = vmul.f32 %v1069, %v1117
        %v1126 = vpack.c.bf16 %v1119, %v1118
        %v1127 = vpack.c.bf16 %v1121, %v1120
        %v1128 = vpack.c.bf16 %v1123, %v1122
        %v1129 = vpack.c.bf16 %v1125, %v1124
        %v1130 = vld [vmem:[%s380] sm:$0xff]
        %v1131 = vld [vmem:[%s380 + $0x8] sm:$0xff]
        %v1132 = vld [vmem:[%s380 + $0x10] sm:$0xff]
        %v1133 = vld [vmem:[%s380 + $0x18] sm:$0xff]
        %v1134 = vld [vmem:[%s380 + $0x20] sm:$0xff]
        %v1135 = vld [vmem:[%s380 + $0x28] sm:$0xff]
        %v1136 = vld [vmem:[%s380 + $0x30] sm:$0xff]
        %v1137 = vld [vmem:[%s380 + $0x38] sm:$0xff]
        %v1138 = vld [vmem:[%s380 + $0x40] sm:$0xff]
        %v1139 = vld [vmem:[%s380 + $0x48] sm:$0xff]
        %v1140 = vld [vmem:[%s380 + $0x50] sm:$0xff]
        %v1141 = vld [vmem:[%s380 + $0x58] sm:$0xff]
        %v1142 = vld [vmem:[%s380 + $0x60] sm:$0xff]
        %v1143 = vld [vmem:[%s380 + $0x68] sm:$0xff]
        %v1144 = vld [vmem:[%s380 + $0x70] sm:$0xff]
        %v1145 = vld [vmem:[%s380 + $0x78] sm:$0xff]
        %v1162 = vunpack.c.l.b16 %v1130
        %v1163 = vunpack.c.h.b16 %v1130
        %v1164 = vunpack.c.l.b16 %v1131
        %v1165 = vunpack.c.h.b16 %v1131
        %v1166 = vunpack.c.l.b16 %v1132
        %v1167 = vunpack.c.h.b16 %v1132
        %v1168 = vunpack.c.l.b16 %v1133
        %v1169 = vunpack.c.h.b16 %v1133
        %v1170 = vunpack.c.l.b16 %v1134
        %v1171 = vunpack.c.h.b16 %v1134
        %v1172 = vunpack.c.l.b16 %v1135
        %v1173 = vunpack.c.h.b16 %v1135
        %v1174 = vunpack.c.l.b16 %v1136
        %v1175 = vunpack.c.h.b16 %v1136
        %v1176 = vunpack.c.l.b16 %v1137
        %v1177 = vunpack.c.h.b16 %v1137
        %v1178 = vunpack.c.l.b16 %v1138
        %v1179 = vunpack.c.h.b16 %v1138
        %v1180 = vunpack.c.l.b16 %v1139
        %v1181 = vunpack.c.h.b16 %v1139
        %v1182 = vunpack.c.l.b16 %v1140
        %v1183 = vunpack.c.h.b16 %v1140
        %v1184 = vunpack.c.l.b16 %v1141
        %v1185 = vunpack.c.h.b16 %v1141
        %v1186 = vunpack.c.l.b16 %v1142
        %v1187 = vunpack.c.h.b16 %v1142
        %v1188 = vunpack.c.l.b16 %v1143
        %v1189 = vunpack.c.h.b16 %v1143
        %v1190 = vunpack.c.l.b16 %v1144
        %v1191 = vunpack.c.h.b16 %v1144
        %v1192 = vunpack.c.l.b16 %v1145
        %v1193 = vunpack.c.h.b16 %v1145
        %v1194 = vpack.c.b16 %v1164, %v1162
        %v1195 = vpack.c.b16 %v1165, %v1163
        %v1196 = vpack.c.b16 %v1168, %v1166
        %v1197 = vpack.c.b16 %v1169, %v1167
        %v1198 = vpack.c.b16 %v1172, %v1170
        %v1199 = vpack.c.b16 %v1173, %v1171
        %v1200 = vpack.c.b16 %v1176, %v1174
        %v1201 = vpack.c.b16 %v1177, %v1175
        %v1202 = vpack.c.b16 %v1180, %v1178
        %v1203 = vpack.c.b16 %v1181, %v1179
        %v1204 = vpack.c.b16 %v1184, %v1182
        %v1205 = vpack.c.b16 %v1185, %v1183
        %v1206 = vpack.c.b16 %v1188, %v1186
        %v1207 = vpack.c.b16 %v1189, %v1187
        %v1208 = vpack.c.b16 %v1192, %v1190
        %v1209 = vpack.c.b16 %v1193, %v1191
        %1226 = vmatprep.subr.bf16.mxu0 %v1209
        %1227 = vmatpush1.bf16.msra.mxu0 %v1208
        %1228 = vmatprep.subr.bf16.mxu0 %v1207
        %1229 = vmatpush1.bf16.msra.mxu0 %v1206
        %1230 = vmatprep.subr.bf16.mxu0 %v1205
        %1231 = vmatpush1.bf16.msra.mxu0 %v1204
        %1232 = vmatprep.subr.bf16.mxu0 %v1203
        %1233 = vmatpush1.bf16.msra.mxu0 %v1202
        %1234 = vmatprep.subr.bf16.mxu0 %v1201
        %1235 = vmatpush1.bf16.msra.mxu0 %v1200
        %1236 = vmatprep.subr.bf16.mxu0 %v1199
        %1237 = vmatpush1.bf16.msra.mxu0 %v1198
        %1238 = vmatprep.subr.bf16.mxu0 %v1197
        %1239 = vmatpush1.bf16.msra.mxu0 %v1196
        %1240 = vmatprep.subr.bf16.mxu0 %v1195
        %1241 = vmatpush1.bf16.msra.mxu0 %v1194
        %1242 = vmatprep.subr.bf16.mxu0 0
        %1243 = vmatpush2.bf16.msra.mxu0 0
        %1244 = vmatprep.subr.bf16.mxu0 0
        %1245 = vmatpush2.bf16.msra.mxu0 0
        %1246 = vmatprep.subr.bf16.mxu0 0
        %1247 = vmatpush2.bf16.msra.mxu0 0
        %1248 = vmatprep.subr.bf16.mxu0 0
        %1249 = vmatpush2.bf16.msra.mxu0 0
        %1250 = vmatprep.subr.bf16.mxu0 0
        %1251 = vmatpush2.bf16.msra.mxu0 0
        %1252 = vmatprep.subr.bf16.mxu0 0
        %1253 = vmatpush2.bf16.msra.mxu0 0
        %1254 = vmatprep.subr.bf16.mxu0 0
        %1255 = vmatpush2.bf16.msra.mxu0 0
        %1256 = vmatprep.subr.bf16.mxu0 0
        %1257 = vmatpush2.bf16.msra.mxu0 0
        %1258 = vmatprep.mubr.bf16.mxu0 0
        %1259 = vmatmul.mubr.bf16.gmra.mxu0 %v1126
        %v1260 = vpop.f32.mrf.mxu0
        %v1261 = vadd.f32 0.0, %v1260
        %v1262 = vpop.f32.mrf.mxu0
        %v1263 = vadd.f32 0.0, %v1262
        %v1264 = vpop.f32.mrf.mxu0
        %v1265 = vadd.f32 0.0, %v1264
        %v1266 = vpop.f32.mrf.mxu0
        %v1267 = vadd.f32 0.0, %v1266
        %1268 = vmatprep.mubr.bf16.mxu0 0
        %1269 = vmatmul.mubr.bf16.gmra.mxu0 %v1127
        %v1270 = vpop.f32.mrf.mxu0
        %v1271 = vadd.f32 0.0, %v1270
        %v1272 = vpop.f32.mrf.mxu0
        %v1273 = vadd.f32 0.0, %v1272
        %v1274 = vpop.f32.mrf.mxu0
        %v1275 = vadd.f32 0.0, %v1274
        %v1276 = vpop.f32.mrf.mxu0
        %v1277 = vadd.f32 0.0, %v1276
        %1278 = vmatprep.mubr.bf16.mxu0 0
        %1279 = vmatmul.mubr.bf16.gmra.mxu0 %v1128
        %v1280 = vpop.f32.mrf.mxu0
        %v1281 = vadd.f32 0.0, %v1280
        %v1282 = vpop.f32.mrf.mxu0
        %v1283 = vadd.f32 0.0, %v1282
        %v1284 = vpop.f32.mrf.mxu0
        %v1285 = vadd.f32 0.0, %v1284
        %v1286 = vpop.f32.mrf.mxu0
        %v1287 = vadd.f32 0.0, %v1286
        %1288 = vmatprep.mubr.bf16.mxu0 0
        %1289 = vmatmul.mubr.bf16.gmra.mxu0 %v1129
        %v1290 = vpop.f32.mrf.mxu0
        %v1291 = vadd.f32 0.0, %v1290
        %v1292 = vpop.f32.mrf.mxu0
        %v1293 = vadd.f32 0.0, %v1292
        %v1294 = vpop.f32.mrf.mxu0
        %v1295 = vadd.f32 0.0, %v1294
        %v1296 = vpop.f32.mrf.mxu0
        %v1297 = vadd.f32 0.0, %v1296
        %1298 = vdwg.mxu0
        %v1299 = vld [vmem:[#allocation3] sm:$0xff]
        %v1300 = vld [vmem:[#allocation3 + $0x8] sm:$0xff]
        %v1301 = vld [vmem:[#allocation3 + $0x10] sm:$0xff]
        %v1302 = vld [vmem:[#allocation3 + $0x18] sm:$0xff]
        %v1303 = vld [vmem:[#allocation3 + $0x20] sm:$0xff]
        %v1304 = vld [vmem:[#allocation3 + $0x28] sm:$0xff]
        %v1305 = vld [vmem:[#allocation3 + $0x30] sm:$0xff]
        %v1306 = vld [vmem:[#allocation3 + $0x38] sm:$0xff]
        %v1307 = vadd.f32 %v1299, %v1261
        %v1308 = vadd.f32 %v1300, %v1265
        %v1309 = vadd.f32 %v1301, %v1271
        %v1310 = vadd.f32 %v1302, %v1275
        %v1311 = vadd.f32 %v1303, %v1281
        %v1312 = vadd.f32 %v1304, %v1285
        %v1313 = vadd.f32 %v1305, %v1291
        %v1314 = vadd.f32 %v1306, %v1295
        %1315 = vst [vmem:[#allocation3] sm:$0xff] %v1307
        %1316 = vst [vmem:[#allocation3 + $0x8] sm:$0xff] %v1308
        %1317 = vst [vmem:[#allocation3 + $0x10] sm:$0xff] %v1309
        %1318 = vst [vmem:[#allocation3 + $0x18] sm:$0xff] %v1310
        %1319 = vst [vmem:[#allocation3 + $0x20] sm:$0xff] %v1311
        %1320 = vst [vmem:[#allocation3 + $0x28] sm:$0xff] %v1312
        %1321 = vst [vmem:[#allocation3 + $0x30] sm:$0xff] %v1313
        %1322 = vst [vmem:[#allocation3 + $0x38] sm:$0xff] %v1314
        %v1323 = vadd.f32 %v529, %v1263
        %v1324 = vadd.f32 %v530, %v1267
        %v1325 = vadd.f32 %v531, %v1273
        %v1326 = vadd.f32 %v532, %v1277
        %v1327 = vadd.f32 %v533, %v1283
        %v1328 = vadd.f32 %v534, %v1287
        %v1329 = vadd.f32 %v535, %v1293
        %v1330 = vadd.f32 %v536, %v1297
        %1331 = vst [vmem:[#allocation2] sm:$0xff] %v1323
        %1332 = vst [vmem:[#allocation2 + $0x8] sm:$0xff] %v1324
        %1333 = vst [vmem:[#allocation2 + $0x10] sm:$0xff] %v1325
        %1334 = vst [vmem:[#allocation2 + $0x18] sm:$0xff] %v1326
        %1335 = vst [vmem:[#allocation2 + $0x20] sm:$0xff] %v1327
        %1336 = vst [vmem:[#allocation2 + $0x28] sm:$0xff] %v1328
        %1337 = vst [vmem:[#allocation2 + $0x30] sm:$0xff] %v1329
        %1338 = vst [vmem:[#allocation2 + $0x38] sm:$0xff] %v1330
        %p1339 = scmp.eq.s32.totalorder %s41, 5
        // Predicated region
        $region81: #{tpu_custom_call.1} parent=55 // pred_check
          %p1340 = pneg %p1339
        $region82: #{tpu_custom_call.1} parent=55 // pred_check_branch
          %1342 = sbr.rel (%p1340) target = $region84
        $region83: #{tpu_custom_call.1} parent=55 // pred_region
          %v1343 = vmax.f32 %v1307, 0.0
          %v1344 = vmax.f32 %v1308, 0.0
          %v1345 = vmax.f32 %v1309, 0.0
          %v1346 = vmax.f32 %v1310, 0.0
          %v1347 = vmax.f32 %v1311, 0.0
          %v1348 = vmax.f32 %v1312, 0.0
          %v1349 = vmax.f32 %v1313, 0.0
          %v1350 = vmax.f32 %v1314, 0.0
          %v1351 = vpack.c.bf16 %v1344, %v1343
          %v1352 = vpack.c.bf16 %v1346, %v1345
          %v1353 = vpack.c.bf16 %v1348, %v1347
          %v1354 = vpack.c.bf16 %v1350, %v1349
          %v1355 = vld [vmem:[%s6] sm:$0xf]
          %v1356 = vld [vmem:[%s6 + $0x4] sm:$0xf]
          %v1357 = vld [vmem:[%s6 + $0x8] sm:$0xf]
          %v1358 = vld [vmem:[%s6 + $0xc] sm:$0xf]
          %v1359 = vld [vmem:[%s6 + $0x10] sm:$0xf]
          %v1360 = vld [vmem:[%s6 + $0x14] sm:$0xf]
          %v1361 = vld [vmem:[%s6 + $0x18] sm:$0xf]
          %v1362 = vld [vmem:[%s6 + $0x1c] sm:$0xf]
          %v1363 = vld [vmem:[%s6 + $0x20] sm:$0xf]
          %v1364 = vld [vmem:[%s6 + $0x24] sm:$0xf]
          %v1365 = vld [vmem:[%s6 + $0x28] sm:$0xf]
          %v1366 = vld [vmem:[%s6 + $0x2c] sm:$0xf]
          %v1367 = vld [vmem:[%s6 + $0x30] sm:$0xf]
          %v1368 = vld [vmem:[%s6 + $0x34] sm:$0xf]
          %v1369 = vld [vmem:[%s6 + $0x38] sm:$0xf]
          %v1370 = vld [vmem:[%s6 + $0x3c] sm:$0xf]
          %v1371 = vld [vmem:[%s7] sm:$0x1]
          %v1373 = vlaneseq
          %v1374 = vshrl.u32 %v1373, 7
          %v1375 = vsub.s32 0, %v1374
          %v1376 = vrot.slane %v1371, %v1375
          %v1394 = vunpack.c.l.b16 %v1355
          %v1395 = vunpack.c.l.b16 %v1356
          %v1396 = vunpack.c.l.b16 %v1357
          %v1397 = vunpack.c.l.b16 %v1358
          %v1398 = vunpack.c.l.b16 %v1359
          %v1399 = vunpack.c.l.b16 %v1360
          %v1400 = vunpack.c.l.b16 %v1361
          %v1401 = vunpack.c.l.b16 %v1362
          %v1402 = vunpack.c.l.b16 %v1363
          %v1403 = vunpack.c.l.b16 %v1364
          %v1404 = vunpack.c.l.b16 %v1365
          %v1405 = vunpack.c.l.b16 %v1366
          %v1406 = vunpack.c.l.b16 %v1367
          %v1407 = vunpack.c.l.b16 %v1368
          %v1408 = vunpack.c.l.b16 %v1369
          %v1409 = vunpack.c.l.b16 %v1370
          %v1410 = vpack.c.b16 %v1395, %v1394
          %v1411 = vpack.c.b16 %v1397, %v1396
          %v1412 = vpack.c.b16 %v1399, %v1398
          %v1413 = vpack.c.b16 %v1401, %v1400
          %v1414 = vpack.c.b16 %v1403, %v1402
          %v1415 = vpack.c.b16 %v1405, %v1404
          %v1416 = vpack.c.b16 %v1407, %v1406
          %v1417 = vpack.c.b16 %v1409, %v1408
          %1426 = vmatprep.subr.bf16.mxu0 0
          %1427 = vmatpush1.bf16.msra.mxu0 %v1417
          %1428 = vmatprep.subr.bf16.mxu0 0
          %1429 = vmatpush1.bf16.msra.mxu0 %v1416
          %1430 = vmatprep.subr.bf16.mxu0 0
          %1431 = vmatpush1.bf16.msra.mxu0 %v1415
          %1432 = vmatprep.subr.bf16.mxu0 0
          %1433 = vmatpush1.bf16.msra.mxu0 %v1414
          %1434 = vmatprep.subr.bf16.mxu0 0
          %1435 = vmatpush1.bf16.msra.mxu0 %v1413
          %1436 = vmatprep.subr.bf16.mxu0 0
          %1437 = vmatpush1.bf16.msra.mxu0 %v1412
          %1438 = vmatprep.subr.bf16.mxu0 0
          %1439 = vmatpush1.bf16.msra.mxu0 %v1411
          %1440 = vmatprep.subr.bf16.mxu0 0
          %1441 = vmatpush1.bf16.msra.mxu0 %v1410
          %1442 = vmatprep.subr.bf16.mxu0 0
          %1443 = vmatpush2.bf16.msra.mxu0 0
          %1444 = vmatprep.subr.bf16.mxu0 0
          %1445 = vmatpush2.bf16.msra.mxu0 0
          %1446 = vmatprep.subr.bf16.mxu0 0
          %1447 = vmatpush2.bf16.msra.mxu0 0
          %1448 = vmatprep.subr.bf16.mxu0 0
          %1449 = vmatpush2.bf16.msra.mxu0 0
          %1450 = vmatprep.subr.bf16.mxu0 0
          %1451 = vmatpush2.bf16.msra.mxu0 0
          %1452 = vmatprep.subr.bf16.mxu0 0
          %1453 = vmatpush2.bf16.msra.mxu0 0
          %1454 = vmatprep.subr.bf16.mxu0 0
          %1455 = vmatpush2.bf16.msra.mxu0 0
          %1456 = vmatprep.subr.bf16.mxu0 0
          %1457 = vmatpush2.bf16.msra.mxu0 0
          %1458 = vmatprep.mubr.bf16.mxu0 0
          %1459 = vmatmul.mubr.bf16.gmra.mxu0 %v1351
          %v1460 = vpop.f32.mrf.mxu0
          %v1461 = vadd.f32 %v1376, %v1460
          %v1462 = vpop.f32.mrf.mxu0
          %v1463 = vpop.f32.mrf.mxu0
          %v1464 = vadd.f32 %v1376, %v1463
          %v1465 = vpop.f32.mrf.mxu0
          %1466 = vmatprep.mubr.bf16.mxu0 0
          %1467 = vmatmul.mubr.bf16.gmra.mxu0 %v1352
          %v1468 = vpop.f32.mrf.mxu0
          %v1469 = vadd.f32 %v1376, %v1468
          %v1470 = vpop.f32.mrf.mxu0
          %v1471 = vpop.f32.mrf.mxu0
          %v1472 = vadd.f32 %v1376, %v1471
          %v1473 = vpop.f32.mrf.mxu0
          %1474 = vmatprep.mubr.bf16.mxu0 0
          %1475 = vmatmul.mubr.bf16.gmra.mxu0 %v1353
          %v1476 = vpop.f32.mrf.mxu0
          %v1477 = vadd.f32 %v1376, %v1476
          %v1478 = vpop.f32.mrf.mxu0
          %v1479 = vpop.f32.mrf.mxu0
          %v1480 = vadd.f32 %v1376, %v1479
          %v1481 = vpop.f32.mrf.mxu0
          %1482 = vmatprep.mubr.bf16.mxu0 0
          %1483 = vmatmul.mubr.bf16.gmra.mxu0 %v1354
          %v1484 = vpop.f32.mrf.mxu0
          %v1485 = vadd.f32 %v1376, %v1484
          %v1486 = vpop.f32.mrf.mxu0
          %v1487 = vpop.f32.mrf.mxu0
          %v1488 = vadd.f32 %v1376, %v1487
          %v1489 = vpop.f32.mrf.mxu0
          %1490 = vdwg.mxu0
          %v1491 = vmax.f32 %v1461, 0.0
          %v1492 = vmax.f32 %v1464, 0.0
          %v1493 = vmax.f32 %v1469, 0.0
          %v1494 = vmax.f32 %v1472, 0.0
          %v1495 = vmax.f32 %v1477, 0.0
          %v1496 = vmax.f32 %v1480, 0.0
          %v1497 = vmax.f32 %v1485, 0.0
          %v1498 = vmax.f32 %v1488, 0.0
          %v1499 = vpack.c.bf16 %v1492, %v1491
          %v1500 = vpack.c.bf16 %v1494, %v1493
          %v1501 = vpack.c.bf16 %v1496, %v1495
          %v1502 = vpack.c.bf16 %v1498, %v1497
          %v1503 = vld [vmem:[%s8] sm:$0xf]
          %v1504 = vld [vmem:[%s8 + $0x4] sm:$0xf]
          %v1505 = vld [vmem:[%s8 + $0x8] sm:$0xf]
          %v1506 = vld [vmem:[%s8 + $0xc] sm:$0xf]
          %v1507 = vld [vmem:[%s8 + $0x10] sm:$0xf]
          %v1508 = vld [vmem:[%s8 + $0x14] sm:$0xf]
          %v1509 = vld [vmem:[%s8 + $0x18] sm:$0xf]
          %v1510 = vld [vmem:[%s8 + $0x1c] sm:$0xf]
          %v1511 = vld [vmem:[%s8 + $0x20] sm:$0xf]
          %v1512 = vld [vmem:[%s8 + $0x24] sm:$0xf]
          %v1513 = vld [vmem:[%s8 + $0x28] sm:$0xf]
          %v1514 = vld [vmem:[%s8 + $0x2c] sm:$0xf]
          %v1515 = vld [vmem:[%s8 + $0x30] sm:$0xf]
          %v1516 = vld [vmem:[%s8 + $0x34] sm:$0xf]
          %v1517 = vld [vmem:[%s8 + $0x38] sm:$0xf]
          %v1518 = vld [vmem:[%s8 + $0x3c] sm:$0xf]
          %v1519 = vld [vmem:[%s9] sm:$0x1]
          %v1521 = vlaneseq
          %v1522 = vshrl.u32 %v1521, 7
          %v1523 = vsub.s32 0, %v1522
          %v1524 = vrot.slane %v1519, %v1523
          %v1542 = vunpack.c.l.b16 %v1503
          %v1543 = vunpack.c.l.b16 %v1504
          %v1544 = vunpack.c.l.b16 %v1505
          %v1545 = vunpack.c.l.b16 %v1506
          %v1546 = vunpack.c.l.b16 %v1507
          %v1547 = vunpack.c.l.b16 %v1508
          %v1548 = vunpack.c.l.b16 %v1509
          %v1549 = vunpack.c.l.b16 %v1510
          %v1550 = vunpack.c.l.b16 %v1511
          %v1551 = vunpack.c.l.b16 %v1512
          %v1552 = vunpack.c.l.b16 %v1513
          %v1553 = vunpack.c.l.b16 %v1514
          %v1554 = vunpack.c.l.b16 %v1515
          %v1555 = vunpack.c.l.b16 %v1516
          %v1556 = vunpack.c.l.b16 %v1517
          %v1557 = vunpack.c.l.b16 %v1518
          %v1558 = vpack.c.b16 %v1543, %v1542
          %v1559 = vpack.c.b16 %v1545, %v1544
          %v1560 = vpack.c.b16 %v1547, %v1546
          %v1561 = vpack.c.b16 %v1549, %v1548
          %v1562 = vpack.c.b16 %v1551, %v1550
          %v1563 = vpack.c.b16 %v1553, %v1552
          %v1564 = vpack.c.b16 %v1555, %v1554
          %v1565 = vpack.c.b16 %v1557, %v1556
          %1574 = vmatprep.subr.bf16.mxu0 0
          %1575 = vmatpush1.bf16.msra.mxu0 %v1565
          %1576 = vmatprep.subr.bf16.mxu0 0
          %1577 = vmatpush1.bf16.msra.mxu0 %v1564
          %1578 = vmatprep.subr.bf16.mxu0 0
          %1579 = vmatpush1.bf16.msra.mxu0 %v1563
          %1580 = vmatprep.subr.bf16.mxu0 0
          %1581 = vmatpush1.bf16.msra.mxu0 %v1562
          %1582 = vmatprep.subr.bf16.mxu0 0
          %1583 = vmatpush1.bf16.msra.mxu0 %v1561
          %1584 = vmatprep.subr.bf16.mxu0 0
          %1585 = vmatpush1.bf16.msra.mxu0 %v1560
          %1586 = vmatprep.subr.bf16.mxu0 0
          %1587 = vmatpush1.bf16.msra.mxu0 %v1559
          %1588 = vmatprep.subr.bf16.mxu0 0
          %1589 = vmatpush1.bf16.msra.mxu0 %v1558
          %1590 = vmatprep.subr.bf16.mxu0 0
          %1591 = vmatpush2.bf16.msra.mxu0 0
          %1592 = vmatprep.subr.bf16.mxu0 0
          %1593 = vmatpush2.bf16.msra.mxu0 0
          %1594 = vmatprep.subr.bf16.mxu0 0
          %1595 = vmatpush2.bf16.msra.mxu0 0
          %1596 = vmatprep.subr.bf16.mxu0 0
          %1597 = vmatpush2.bf16.msra.mxu0 0
          %1598 = vmatprep.subr.bf16.mxu0 0
          %1599 = vmatpush2.bf16.msra.mxu0 0
          %1600 = vmatprep.subr.bf16.mxu0 0
          %1601 = vmatpush2.bf16.msra.mxu0 0
          %1602 = vmatprep.subr.bf16.mxu0 0
          %1603 = vmatpush2.bf16.msra.mxu0 0
          %1604 = vmatprep.subr.bf16.mxu0 0
          %1605 = vmatpush2.bf16.msra.mxu0 0
          %1606 = vmatprep.mubr.bf16.mxu0 0
          %1607 = vmatmul.mubr.bf16.gmra.mxu0 %v1499
          %v1608 = vpop.f32.mrf.mxu0
          %v1609 = vadd.f32 %v1524, %v1608
          %v1610 = vpop.f32.mrf.mxu0
          %v1611 = vpop.f32.mrf.mxu0
          %v1612 = vadd.f32 %v1524, %v1611
          %v1613 = vpop.f32.mrf.mxu0
          %1614 = vmatprep.mubr.bf16.mxu0 0
          %1615 = vmatmul.mubr.bf16.gmra.mxu0 %v1500
          %v1616 = vpop.f32.mrf.mxu0
          %v1617 = vadd.f32 %v1524, %v1616
          %v1618 = vpop.f32.mrf.mxu0
          %v1619 = vpop.f32.mrf.mxu0
          %v1620 = vadd.f32 %v1524, %v1619
          %v1621 = vpop.f32.mrf.mxu0
          %1622 = vmatprep.mubr.bf16.mxu0 0
          %1623 = vmatmul.mubr.bf16.gmra.mxu0 %v1501
          %v1624 = vpop.f32.mrf.mxu0
          %v1625 = vadd.f32 %v1524, %v1624
          %v1626 = vpop.f32.mrf.mxu0
          %v1627 = vpop.f32.mrf.mxu0
          %v1628 = vadd.f32 %v1524, %v1627
          %v1629 = vpop.f32.mrf.mxu0
          %1630 = vmatprep.mubr.bf16.mxu0 0
          %1631 = vmatmul.mubr.bf16.gmra.mxu0 %v1502
          %v1632 = vpop.f32.mrf.mxu0
          %v1633 = vadd.f32 %v1524, %v1632
          %v1634 = vpop.f32.mrf.mxu0
          %v1635 = vpop.f32.mrf.mxu0
          %v1636 = vadd.f32 %v1524, %v1635
          %v1637 = vpop.f32.mrf.mxu0
          %1638 = vdwg.mxu0
          %1639 = vst [vmem:[%s424] sm:$0xff] %v1609
          %1640 = vst [vmem:[%s424 + $0x8] sm:$0xff] %v1612
          %1641 = vst [vmem:[%s424 + $0x10] sm:$0xff] %v1617
          %1642 = vst [vmem:[%s424 + $0x18] sm:$0xff] %v1620
          %1643 = vst [vmem:[%s424 + $0x20] sm:$0xff] %v1625
          %1644 = vst [vmem:[%s424 + $0x28] sm:$0xff] %v1628
          %1645 = vst [vmem:[%s424 + $0x30] sm:$0xff] %v1633
          %1646 = vst [vmem:[%s424 + $0x38] sm:$0xff] %v1636
        $region84: #{tpu_custom_call.1} parent=55 // pred_fallthru
          _
        %s1647 = sand.u32 %s260, 1
        %s1648 = scalar_lea.sflag [#allocation9], %s1647
        %s1649 = sand.u32 %s260, 1
        %s1650 = smul.addr %s1649, 64
        %s1651 = scalar_lea.vmem [#allocation12], %s1650
        // Predicated region
        $region85: #{tpu_custom_call.1} parent=55 // pred_check
          %p1652 = pneg %p270
        $region86: #{tpu_custom_call.1} parent=55 // pred_check_branch
          %1654 = sbr.rel (%p1652) target = $region88
        $region87: #{tpu_custom_call.1} parent=55 // pred_region
          %s1656 = ssub.s32 1024, 1024
          %1657 = vsyncadd %s1648, %s1656
          %s1658 = smul.addr %s40, 8
          %s1659 = smul.addr %s1658, 128
          %s1660 = scalar_lea.hbm %s10, %s1659
          %s1661 = sshll.u32 %s1651, 4
          %s1662 = int_to_ptr.vmem [resolvable:$true] %s1661
          %1667 = dma.vmem_to_hbm [thread:$0]  %s1662, 1024, %s1660, %s1648, 128, 128, 8
        $region88: #{tpu_custom_call.1} parent=55 // pred_fallthru
          _
      $region56: #{tpu_custom_call.1} parent=5 // pred_fallthru
        _
      %p1668 = scmp.le.s32.totalorder 2, %s31
      // Predicated region
      $region89: #{tpu_custom_call.1} parent=5 // pred_check
        %p1669 = pneg %p1668
      $region90: #{tpu_custom_call.1} parent=5 // pred_check_branch
        %1671 = sbr.rel (%p1669) target = $region92
      $region91: #{tpu_custom_call.1} parent=5 // pred_region
        %s1672 = ssub.s32 %s31, 2
        // Predicated region
        $region93: #{tpu_custom_call.1} parent=91 // pred_check
          %p1673 = pneg %p276
        $region94: #{tpu_custom_call.1} parent=91 // pred_check_branch
          %1675 = sbr.rel (%p1673) target = $region96
        $region95: #{tpu_custom_call.1} parent=91 // pred_region
          %s1676 = sand.u32 %s261, 1
          %s1677 = scalar_lea.sflag [#allocation9], %s1676
          %s1678 = sand.u32 %s261, 1
          %s1679 = smul.addr %s1678, 64
          %s1680 = scalar_lea.vmem [#allocation12], %s1679
          %1681 = dma.done %s1677, 1024
        $region96: #{tpu_custom_call.1} parent=91 // pred_fallthru
          _
      $region92: #{tpu_custom_call.1} parent=5 // pred_fallthru
        _
    $region6: #{tpu_custom_call.1} parent=1 // loop_footer
      %s35 = sadd.s32 1, %s31
    $region7: #{tpu_custom_call.1} parent=1 // loop_footer_branch
      %30 = sbr.rel target = $region3
    $region8: #{tpu_custom_call.1} parent=1 // loop_exit
      _
    %1682 = vsyncpa [#allocation8], 1
    %s1683 = scalar_lea.sflag [#allocation8], 1
    %1684 = vsyncpa %s1683, 1
    %1685 = vsyncpa [#allocation11], 1
    %s1686 = scalar_lea.sflag [#allocation11], 1
    %1687 = vsyncpa %s1686, 1
    %1688 = vsyncpa [#allocation9], 1
    %s1689 = scalar_lea.sflag [#allocation9], 1
    %1690 = vsyncpa %s1689, 1

</llo_original>
